<compile_context>
chip_gen: v7x
topology: tpu7x:2x2x1
jax: 0.10.0
libtpu: 0.0.40
codegen_flags: <defaults>
</compile_context>

<pallas_src>
import jax
import jax.numpy as jnp
from jax.experimental import pallas as pl
from jax.experimental.pallas import tpu as pltpu


def lstm_kernel(x_ref,       # (T, B, 1)  f32 time-major input
                small_ref,   # (8, 4H)    f32 packed small params
                wrec_ref,    # (H, 12H)   bf16 [whh0 | wih1 | whh1] (gate-reordered)
                out_ref,     # (B, 1)     f32
                xg0_ref):    # (T, B, 4H) f32 VMEM scratch
    T, B, _ = x_ref.shape
    H4 = small_ref.shape[1]
    H = H4 // 4
    H2 = 2 * H
    H3 = 3 * H
    H8 = 8 * H

    # ---- unpack the coalesced small-parameter slab (one DMA instead of five) ----
    wih0 = small_ref[0:1, :]          # (1, 4H) layer-0 input weights
    b0 = small_ref[1:2, :]            # (1, 4H) layer-0 combined bias
    b1 = small_ref[2:3, :]            # (1, 4H) layer-1 combined bias
    wlin = small_ref[3:4, :H]         # (1, H)  head weight row
    blin = small_ref[4:5, 0:1]        # (1, 1)  head bias

    # Loop-invariant recurrent weights (bf16 MXU operands, f32 accumulation).
    w_top = wrec_ref[:, :H8]          # (H, 8H) = [whh0 | wih1]
    w_hh1 = wrec_ref[:, H8:]          # (H, 4H)

    # Layer-0 input projection for ALL timesteps at once (input_size == 1, so
    # this is a pure VPU broadcast multiply, no K=1 matmul).  Staged through a
    # VMEM scratch so the (T,B,4H) slab does not pin vregs across the unrolled
    # recurrence; the per-step re-load is off the critical path.
    xg0_ref[...] = (x_ref[...] * wih0.reshape(1, 1, H4)
                    + b0.reshape(1, 1, H4))

    def gates_to_hc(g, c):
        # Gate layout (reordered at init): [i, f, o | g].
        # Sigmoid over the whole (B,4H) slab (the extra H lanes are free on the
        # EUP and avoid a mid-vreg boundary at lane 3H); tanh over the last H.
        sig = jax.nn.sigmoid(g)
        gg = jnp.tanh(g[:, H3:])
        c_new = sig[:, H:H2] * c + sig[:, 0:H] * gg
        h_new = sig[:, H2:H3] * jnp.tanh(c_new)
        return h_new, c_new

    zeros = jnp.zeros((B, H), jnp.float32)
    c1, c2, h2 = zeros, zeros, zeros
    r0 = jnp.zeros((B, H4), jnp.float32)   # h1(t-1) @ whh0   (h1(-1) == 0)
    r1 = jnp.zeros((B, H4), jnp.float32)   # h2(t-1) @ whh1   (h2(-1) == 0)

    # T is static -> fully unrolled recurrence (scheduler sees across steps).
    for t in range(T):
        # ---- layer 0: recurrent term already produced by step t-1's matmul ----
        g0 = xg0_ref[t] + r0
        h1, c1 = gates_to_hc(g0, c1)

        # ---- the ONE critical-path MXU matmul per step: [h1@whh0 | h1@wih1] ----
        top = jnp.dot(h1.astype(jnp.bfloat16), w_top,
                      preferred_element_type=jnp.float32)       # (B, 8H)
        r0 = top[:, :H4]                   # feeds layer 0 at step t+1
        g1 = top[:, H4:] + r1 + b1         # layer-1 gates for step t

        # ---- layer 1 ----
        h2, c2 = gates_to_hc(g1, c2)

        # Off-critical-path: h2(t) @ whh1 is only needed at step t+1.
        if t + 1 < T:
            r1 = jnp.dot(h2.astype(jnp.bfloat16), w_hh1,
                         preferred_element_type=jnp.float32)    # (B, 4H)

    # Linear head on the last timestep's top-layer hidden state.
    # K=64, N=1 -> VPU multiply + lane reduction, not an MXU push.
    out_ref[...] = jnp.sum(h2 * wlin, axis=-1, keepdims=True) + blin


def _reorder_gates(w):
    """Reorder the last (4H) axis from PyTorch's [i, f, g, o] to [i, f, o, g]."""
    i, f, g, o = jnp.split(w, 4, axis=-1)
    return jnp.concatenate([i, f, o, g], axis=-1)


def init_params(key, input_size, hidden_size):
    """PyTorch-style uniform(-1/sqrt(H), 1/sqrt(H)) init, deterministic.
    Returns raw PyTorch-layout parameters (used by the pure-JAX reference)."""
    k = 1.0 / jnp.sqrt(jnp.float32(hidden_size))
    keys = jax.random.split(key, 10)
    H, I = hidden_size, input_size

    def u(kk, shape):
        return jax.random.uniform(kk, shape, jnp.float32, minval=-k, maxval=k)

    return dict(
        w_ih0=u(keys[0], (4 * H, I)),
        w_hh0=u(keys[1], (4 * H, H)),
        b_ih0=u(keys[2], (4 * H,)),
        b_hh0=u(keys[3], (4 * H,)),
        w_ih1=u(keys[4], (4 * H, H)),
        w_hh1=u(keys[5], (4 * H, H)),
        b_ih1=u(keys[6], (4 * H,)),
        b_hh1=u(keys[7], (4 * H,)),
        w_lin=u(keys[8], (1, H)),
        b_lin=u(keys[9], (1,)),
    )


def pack_params(raw):
    """Pack raw PyTorch-layout weights into the kernel's fused/reordered layout."""
    H = raw["w_hh0"].shape[1]
    H4 = 4 * H

    wih0_t = _reorder_gates(raw["w_ih0"].T)                       # (1, 4H)
    whh0_t = _reorder_gates(raw["w_hh0"].T)                       # (H, 4H)
    wih1_t = _reorder_gates(raw["w_ih1"].T)                       # (H, 4H)
    whh1_t = _reorder_gates(raw["w_hh1"].T)                       # (H, 4H)
    b0 = _reorder_gates((raw["b_ih0"] + raw["b_hh0"]).reshape(1, H4))
    b1 = _reorder_gates((raw["b_ih1"] + raw["b_hh1"]).reshape(1, H4))

    # Recurrent weights in one bf16 slab [whh0 | wih1 | whh1]: no zero block,
    # half the DMA bytes, native bf16 MXU operands (f32 accumulation in-kernel).
    w_rec = jnp.concatenate([whh0_t, wih1_t, whh1_t], axis=1).astype(jnp.bfloat16)

    # All small parameters coalesced into one (8, 4H) f32 slab (one DMA).
    small = jnp.zeros((8, H4), jnp.float32)
    small = small.at[0, :].set(wih0_t[0])
    small = small.at[1, :].set(b0[0])
    small = small.at[2, :].set(b1[0])
    small = small.at[3, :H].set(raw["w_lin"][0])
    small = small.at[4, 0].set(raw["b_lin"][0])

    return dict(small=small, w_rec=w_rec)


def lstm_model_forward(x, kp):
    """x: (B, T, I) float32 (batch_first, like PyTorch). Returns (B,)."""
    B, T, I = x.shape
    H4 = kp["small"].shape[1]
    x_tbi = jnp.transpose(x, (1, 0, 2))  # time-major for the kernel

    vmem = pl.BlockSpec(memory_space=pltpu.MemorySpace.VMEM)
    out = pl.pallas_call(
        lstm_kernel,
        out_shape=jax.ShapeDtypeStruct((B, 1), jnp.float32),
        in_specs=[vmem, vmem, vmem],
        out_specs=vmem,
        scratch_shapes=[pltpu.VMEM((T, B, H4), jnp.float32)],
    )(x_tbi, kp["small"], kp["w_rec"])

    return out[:, 0]  # .squeeze() of (B, 1) -> (B,)


def lstm_model_reference(x, raw):
    """Pure-JAX f32 reference using the RAW PyTorch-layout weights."""
    B, T, I = x.shape
    H = raw["w_hh0"].shape[1]

    def cell(x_t, h, c, w_ih, w_hh, b_ih, b_hh):
        g = x_t @ w_ih.T + h @ w_hh.T + b_ih + b_hh
        i = jax.nn.sigmoid(g[:, 0 * H:1 * H])
        f = jax.nn.sigmoid(g[:, 1 * H:2 * H])
        gg = jnp.tanh(g[:, 2 * H:3 * H])
        o = jax.nn.sigmoid(g[:, 3 * H:4 * H])
        c = f * c + i * gg
        h = o * jnp.tanh(c)
        return h, c

    h1 = c1 = h2 = c2 = jnp.zeros((B, H), jnp.float32)
    for t in range(T):
        h1, c1 = cell(x[:, t, :], h1, c1,
                      raw["w_ih0"], raw["w_hh0"], raw["b_ih0"], raw["b_hh0"])
        h2, c2 = cell(h1, h2, c2,
                      raw["w_ih1"], raw["w_hh1"], raw["b_ih1"], raw["b_hh1"])
    return (h2 @ raw["w_lin"].T + raw["b_lin"])[:, 0]


if __name__ == "__main__":
    B, T, I, H = 2, 8, 1, 64

    key = jax.random.PRNGKey(0)
    k_x, k_p = jax.random.split(key)
    x = jax.random.normal(k_x, (B, T, I), jnp.float32)

    raw = init_params(k_p, input_size=I, hidden_size=H)
    kp = pack_params(raw)

    y = jax.block_until_ready(lstm_model_forward(x, kp))
    y_ref = lstm_model_reference(x, raw)

    assert y.shape == (B,), y.shape
    # Tolerance loosened vs. the pure-f32 version: matmul operands are bf16
    # (f32 accumulation), so inputs carry bf16 rounding through the recurrence.
    assert jnp.allclose(y, y_ref, atol=1e-2, rtol=1e-2), (y, y_ref)

    print("KERNEL_OK")
</pallas_src>

<mosaic_0001>
module attributes {stable_mosaic.version = 11 : i64} {
  func.func @lstm_kernel(%arg0: memref<8x2x1xf32, #tpu.memory_space<vmem>>, %arg1: memref<8x256xf32, #tpu.memory_space<vmem>>, %arg2: memref<64x768xbf16, #tpu.memory_space<vmem>>, %arg3: memref<2x1xf32, #tpu.memory_space<vmem>>, %arg4: memref<8x2x256xf32, #tpu.memory_space<vmem>>) attributes {dimension_semantics = [], scalar_prefetch = 0 : i64, scratch_operands = 1 : i64, tpu.core_type = #tpu.core_type<tc>} {
    %c0 = arith.constant 0 : index
    %c0_0 = arith.constant 0 : index
    %0 = vector.load %arg1[%c0, %c0_0] : memref<8x256xf32, #tpu.memory_space<vmem>>, vector<1x256xf32>
    %c1 = arith.constant 1 : index
    %c0_1 = arith.constant 0 : index
    %1 = vector.load %arg1[%c1, %c0_1] : memref<8x256xf32, #tpu.memory_space<vmem>>, vector<1x256xf32>
    %c2 = arith.constant 2 : index
    %c0_2 = arith.constant 0 : index
    %2 = vector.load %arg1[%c2, %c0_2] : memref<8x256xf32, #tpu.memory_space<vmem>>, vector<1x256xf32>
    %c3 = arith.constant 3 : index
    %c0_3 = arith.constant 0 : index
    %3 = vector.load %arg1[%c3, %c0_3] : memref<8x256xf32, #tpu.memory_space<vmem>>, vector<1x64xf32>
    %c4 = arith.constant 4 : index
    %c0_4 = arith.constant 0 : index
    %4 = vector.load %arg1[%c4, %c0_4] : memref<8x256xf32, #tpu.memory_space<vmem>>, vector<1x1xf32>
    %c0_5 = arith.constant 0 : index
    %c0_6 = arith.constant 0 : index
    %5 = vector.load %arg2[%c0_5, %c0_6] : memref<64x768xbf16, #tpu.memory_space<vmem>>, vector<64x512xbf16>
    %c0_7 = arith.constant 0 : index
    %c512 = arith.constant 512 : index
    %6 = vector.load %arg2[%c0_7, %c512] : memref<64x768xbf16, #tpu.memory_space<vmem>>, vector<64x256xbf16>
    %c0_8 = arith.constant 0 : index
    %c0_9 = arith.constant 0 : index
    %c0_10 = arith.constant 0 : index
    %7 = vector.load %arg0[%c0_8, %c0_9, %c0_10] : memref<8x2x1xf32, #tpu.memory_space<vmem>>, vector<8x2x1xf32>
    %8 = vector.shape_cast %0 : vector<1x256xf32> to vector<1x1x256xf32>
    %9 = vector.broadcast %7 : vector<8x2x1xf32> to vector<8x2x256xf32>
    %10 = vector.broadcast %8 : vector<1x1x256xf32> to vector<8x2x256xf32>
    %11 = arith.mulf %9, %10 : vector<8x2x256xf32>
    %12 = vector.shape_cast %1 : vector<1x256xf32> to vector<1x1x256xf32>
    %13 = vector.broadcast %12 : vector<1x1x256xf32> to vector<8x2x256xf32>
    %14 = arith.addf %11, %13 : vector<8x2x256xf32>
    %c0_11 = arith.constant 0 : index
    %c0_12 = arith.constant 0 : index
    %c0_13 = arith.constant 0 : index
    %15 = vector.load %arg4[%c0_11, %c0_12, %c0_13] : memref<8x2x256xf32, #tpu.memory_space<vmem>>, vector<8x2x256xf32>
    tpu.vector_store %arg4[%c0_11, %c0_12, %c0_13], %14 {strides = array<i32>} : memref<8x2x256xf32, #tpu.memory_space<vmem>>, vector<8x2x256xf32>,
    %cst = arith.constant 0.000000e+00 : f32
    %16 = vector.broadcast %cst : f32 to vector<2x64xf32>
    %cst_14 = arith.constant 0.000000e+00 : f32
    %17 = vector.broadcast %cst_14 : f32 to vector<2x256xf32>
    %cst_15 = arith.constant 0.000000e+00 : f32
    %18 = vector.broadcast %cst_15 : f32 to vector<2x256xf32>
    %c0_16 = arith.constant 0 : index
    %c0_17 = arith.constant 0 : index
    %c0_18 = arith.constant 0 : index
    %19 = vector.load %arg4[%c0_16, %c0_17, %c0_18] : memref<8x2x256xf32, #tpu.memory_space<vmem>>, vector<1x2x256xf32>
    %20 = vector.shape_cast %19 : vector<1x2x256xf32> to vector<2x256xf32>
    %21 = arith.addf %20, %17 : vector<2x256xf32>
    %22 = arith.negf %21 : vector<2x256xf32>
    %23 = math.exp %22 : vector<2x256xf32>
    %cst_19 = arith.constant 1.000000e+00 : f32
    %24 = vector.broadcast %cst_19 : f32 to vector<2x256xf32>
    %25 = arith.addf %24, %23 : vector<2x256xf32>
    %26 = arith.divf %24, %25 : vector<2x256xf32>
    %27 = vector.extract_strided_slice %21 {offsets = [0, 192], sizes = [2, 64], strides = [1, 1]} : vector<2x256xf32> to vector<2x64xf32>
    %28 = math.tanh %27 : vector<2x64xf32>
    %29 = vector.extract_strided_slice %26 {offsets = [0, 64], sizes = [2, 64], strides = [1, 1]} : vector<2x256xf32> to vector<2x64xf32>
    %30 = arith.mulf %29, %16 : vector<2x64xf32>
    %31 = vector.extract_strided_slice %26 {offsets = [0, 0], sizes = [2, 64], strides = [1, 1]} : vector<2x256xf32> to vector<2x64xf32>
    %32 = arith.mulf %31, %28 : vector<2x64xf32>
    %33 = arith.addf %30, %32 : vector<2x64xf32>
    %34 = vector.extract_strided_slice %26 {offsets = [0, 128], sizes = [2, 64], strides = [1, 1]} : vector<2x256xf32> to vector<2x64xf32>
    %35 = math.tanh %33 : vector<2x64xf32>
    %36 = arith.mulf %34, %35 : vector<2x64xf32>
    %37 = arith.truncf %36 : vector<2x64xf32> to vector<2x64xbf16>
    %cst_20 = arith.constant dense<0.000000e+00> : vector<2x512xf32>
    %38 = tpu.matmul %37, %5, %cst_20 {dimension_numbers = #tpu.dot_dimension_numbers<[1], [0], [0], [1], [0, 0, 1, 1], [], []>} : vector<2x64xbf16>, vector<64x512xbf16>, vector<2x512xf32> -> vector<2x512xf32>
    %39 = vector.extract_strided_slice %38 {offsets = [0, 0], sizes = [2, 256], strides = [1, 1]} : vector<2x512xf32> to vector<2x256xf32>
    %40 = vector.extract_strided_slice %38 {offsets = [0, 256], sizes = [2, 256], strides = [1, 1]} : vector<2x512xf32> to vector<2x256xf32>
    %41 = arith.addf %40, %18 : vector<2x256xf32>
    %42 = vector.broadcast %2 : vector<1x256xf32> to vector<2x256xf32>
    %43 = arith.addf %41, %42 : vector<2x256xf32>
    %44 = arith.negf %43 : vector<2x256xf32>
    %45 = math.exp %44 : vector<2x256xf32>
    %cst_21 = arith.constant 1.000000e+00 : f32
    %46 = vector.broadcast %cst_21 : f32 to vector<2x256xf32>
    %47 = arith.addf %46, %45 : vector<2x256xf32>
    %48 = arith.divf %46, %47 : vector<2x256xf32>
    %49 = vector.extract_strided_slice %43 {offsets = [0, 192], sizes = [2, 64], strides = [1, 1]} : vector<2x256xf32> to vector<2x64xf32>
    %50 = math.tanh %49 : vector<2x64xf32>
    %51 = vector.extract_strided_slice %48 {offsets = [0, 64], sizes = [2, 64], strides = [1, 1]} : vector<2x256xf32> to vector<2x64xf32>
    %52 = arith.mulf %51, %16 : vector<2x64xf32>
    %53 = vector.extract_strided_slice %48 {offsets = [0, 0], sizes = [2, 64], strides = [1, 1]} : vector<2x256xf32> to vector<2x64xf32>
    %54 = arith.mulf %53, %50 : vector<2x64xf32>
    %55 = arith.addf %52, %54 : vector<2x64xf32>
    %56 = vector.extract_strided_slice %48 {offsets = [0, 128], sizes = [2, 64], strides = [1, 1]} : vector<2x256xf32> to vector<2x64xf32>
    %57 = math.tanh %55 : vector<2x64xf32>
    %58 = arith.mulf %56, %57 : vector<2x64xf32>
    %59 = arith.truncf %58 : vector<2x64xf32> to vector<2x64xbf16>
    %cst_22 = arith.constant dense<0.000000e+00> : vector<2x256xf32>
    %60 = tpu.matmul %59, %6, %cst_22 {dimension_numbers = #tpu.dot_dimension_numbers<[1], [0], [0], [1], [0, 0, 1, 1], [], []>} : vector<2x64xbf16>, vector<64x256xbf16>, vector<2x256xf32> -> vector<2x256xf32>
    %c1_23 = arith.constant 1 : index
    %c0_24 = arith.constant 0 : index
    %c0_25 = arith.constant 0 : index
    %61 = vector.load %arg4[%c1_23, %c0_24, %c0_25] : memref<8x2x256xf32, #tpu.memory_space<vmem>>, vector<1x2x256xf32>
    %62 = vector.shape_cast %61 : vector<1x2x256xf32> to vector<2x256xf32>
    %63 = arith.addf %62, %39 : vector<2x256xf32>
    %64 = arith.negf %63 : vector<2x256xf32>
    %65 = math.exp %64 : vector<2x256xf32>
    %cst_26 = arith.constant 1.000000e+00 : f32
    %66 = vector.broadcast %cst_26 : f32 to vector<2x256xf32>
    %67 = arith.addf %66, %65 : vector<2x256xf32>
    %68 = arith.divf %66, %67 : vector<2x256xf32>
    %69 = vector.extract_strided_slice %63 {offsets = [0, 192], sizes = [2, 64], strides = [1, 1]} : vector<2x256xf32> to vector<2x64xf32>
    %70 = math.tanh %69 : vector<2x64xf32>
    %71 = vector.extract_strided_slice %68 {offsets = [0, 64], sizes = [2, 64], strides = [1, 1]} : vector<2x256xf32> to vector<2x64xf32>
    %72 = arith.mulf %71, %33 : vector<2x64xf32>
    %73 = vector.extract_strided_slice %68 {offsets = [0, 0], sizes = [2, 64], strides = [1, 1]} : vector<2x256xf32> to vector<2x64xf32>
    %74 = arith.mulf %73, %70 : vector<2x64xf32>
    %75 = arith.addf %72, %74 : vector<2x64xf32>
    %76 = vector.extract_strided_slice %68 {offsets = [0, 128], sizes = [2, 64], strides = [1, 1]} : vector<2x256xf32> to vector<2x64xf32>
    %77 = math.tanh %75 : vector<2x64xf32>
    %78 = arith.mulf %76, %77 : vector<2x64xf32>
    %79 = arith.truncf %78 : vector<2x64xf32> to vector<2x64xbf16>
    %cst_27 = arith.constant dense<0.000000e+00> : vector<2x512xf32>
    %80 = tpu.matmul %79, %5, %cst_27 {dimension_numbers = #tpu.dot_dimension_numbers<[1], [0], [0], [1], [0, 0, 1, 1], [], []>} : vector<2x64xbf16>, vector<64x512xbf16>, vector<2x512xf32> -> vector<2x512xf32>
    %81 = vector.extract_strided_slice %80 {offsets = [0, 0], sizes = [2, 256], strides = [1, 1]} : vector<2x512xf32> to vector<2x256xf32>
    %82 = vector.extract_strided_slice %80 {offsets = [0, 256], sizes = [2, 256], strides = [1, 1]} : vector<2x512xf32> to vector<2x256xf32>
    %83 = arith.addf %82, %60 : vector<2x256xf32>
    %84 = vector.broadcast %2 : vector<1x256xf32> to vector<2x256xf32>
    %85 = arith.addf %83, %84 : vector<2x256xf32>
    %86 = arith.negf %85 : vector<2x256xf32>
    %87 = math.exp %86 : vector<2x256xf32>
    %cst_28 = arith.constant 1.000000e+00 : f32
    %88 = vector.broadcast %cst_28 : f32 to vector<2x256xf32>
    %89 = arith.addf %88, %87 : vector<2x256xf32>
    %90 = arith.divf %88, %89 : vector<2x256xf32>
    %91 = vector.extract_strided_slice %85 {offsets = [0, 192], sizes = [2, 64], strides = [1, 1]} : vector<2x256xf32> to vector<2x64xf32>
    %92 = math.tanh %91 : vector<2x64xf32>
    %93 = vector.extract_strided_slice %90 {offsets = [0, 64], sizes = [2, 64], strides = [1, 1]} : vector<2x256xf32> to vector<2x64xf32>
    %94 = arith.mulf %93, %55 : vector<2x64xf32>
    %95 = vector.extract_strided_slice %90 {offsets = [0, 0], sizes = [2, 64], strides = [1, 1]} : vector<2x256xf32> to vector<2x64xf32>
    %96 = arith.mulf %95, %92 : vector<2x64xf32>
    %97 = arith.addf %94, %96 : vector<2x64xf32>
    %98 = vector.extract_strided_slice %90 {offsets = [0, 128], sizes = [2, 64], strides = [1, 1]} : vector<2x256xf32> to vector<2x64xf32>
    %99 = math.tanh %97 : vector<2x64xf32>
    %100 = arith.mulf %98, %99 : vector<2x64xf32>
    %101 = arith.truncf %100 : vector<2x64xf32> to vector<2x64xbf16>
    %cst_29 = arith.constant dense<0.000000e+00> : vector<2x256xf32>
    %102 = tpu.matmul %101, %6, %cst_29 {dimension_numbers = #tpu.dot_dimension_numbers<[1], [0], [0], [1], [0, 0, 1, 1], [], []>} : vector<2x64xbf16>, vector<64x256xbf16>, vector<2x256xf32> -> vector<2x256xf32>
    %c2_30 = arith.constant 2 : index
    %c0_31 = arith.constant 0 : index
    %c0_32 = arith.constant 0 : index
    %103 = vector.load %arg4[%c2_30, %c0_31, %c0_32] : memref<8x2x256xf32, #tpu.memory_space<vmem>>, vector<1x2x256xf32>
    %104 = vector.shape_cast %103 : vector<1x2x256xf32> to vector<2x256xf32>
    %105 = arith.addf %104, %81 : vector<2x256xf32>
    %106 = arith.negf %105 : vector<2x256xf32>
    %107 = math.exp %106 : vector<2x256xf32>
    %cst_33 = arith.constant 1.000000e+00 : f32
    %108 = vector.broadcast %cst_33 : f32 to vector<2x256xf32>
    %109 = arith.addf %108, %107 : vector<2x256xf32>
    %110 = arith.divf %108, %109 : vector<2x256xf32>
    %111 = vector.extract_strided_slice %105 {offsets = [0, 192], sizes = [2, 64], strides = [1, 1]} : vector<2x256xf32> to vector<2x64xf32>
    %112 = math.tanh %111 : vector<2x64xf32>
    %113 = vector.extract_strided_slice %110 {offsets = [0, 64], sizes = [2, 64], strides = [1, 1]} : vector<2x256xf32> to vector<2x64xf32>
    %114 = arith.mulf %113, %75 : vector<2x64xf32>
    %115 = vector.extract_strided_slice %110 {offsets = [0, 0], sizes = [2, 64], strides = [1, 1]} : vector<2x256xf32> to vector<2x64xf32>
    %116 = arith.mulf %115, %112 : vector<2x64xf32>
    %117 = arith.addf %114, %116 : vector<2x64xf32>
    %118 = vector.extract_strided_slice %110 {offsets = [0, 128], sizes = [2, 64], strides = [1, 1]} : vector<2x256xf32> to vector<2x64xf32>
    %119 = math.tanh %117 : vector<2x64xf32>
    %120 = arith.mulf %118, %119 : vector<2x64xf32>
    %121 = arith.truncf %120 : vector<2x64xf32> to vector<2x64xbf16>
    %cst_34 = arith.constant dense<0.000000e+00> : vector<2x512xf32>
    %122 = tpu.matmul %121, %5, %cst_34 {dimension_numbers = #tpu.dot_dimension_numbers<[1], [0], [0], [1], [0, 0, 1, 1], [], []>} : vector<2x64xbf16>, vector<64x512xbf16>, vector<2x512xf32> -> vector<2x512xf32>
    %123 = vector.extract_strided_slice %122 {offsets = [0, 0], sizes = [2, 256], strides = [1, 1]} : vector<2x512xf32> to vector<2x256xf32>
    %124 = vector.extract_strided_slice %122 {offsets = [0, 256], sizes = [2, 256], strides = [1, 1]} : vector<2x512xf32> to vector<2x256xf32>
    %125 = arith.addf %124, %102 : vector<2x256xf32>
    %126 = vector.broadcast %2 : vector<1x256xf32> to vector<2x256xf32>
    %127 = arith.addf %125, %126 : vector<2x256xf32>
    %128 = arith.negf %127 : vector<2x256xf32>
    %129 = math.exp %128 : vector<2x256xf32>
    %cst_35 = arith.constant 1.000000e+00 : f32
    %130 = vector.broadcast %cst_35 : f32 to vector<2x256xf32>
    %131 = arith.addf %130, %129 : vector<2x256xf32>
    %132 = arith.divf %130, %131 : vector<2x256xf32>
    %133 = vector.extract_strided_slice %127 {offsets = [0, 192], sizes = [2, 64], strides = [1, 1]} : vector<2x256xf32> to vector<2x64xf32>
    %134 = math.tanh %133 : vector<2x64xf32>
    %135 = vector.extract_strided_slice %132 {offsets = [0, 64], sizes = [2, 64], strides = [1, 1]} : vector<2x256xf32> to vector<2x64xf32>
    %136 = arith.mulf %135, %97 : vector<2x64xf32>
    %137 = vector.extract_strided_slice %132 {offsets = [0, 0], sizes = [2, 64], strides = [1, 1]} : vector<2x256xf32> to vector<2x64xf32>
    %138 = arith.mulf %137, %134 : vector<2x64xf32>
    %139 = arith.addf %136, %138 : vector<2x64xf32>
    %140 = vector.extract_strided_slice %132 {offsets = [0, 128], sizes = [2, 64], strides = [1, 1]} : vector<2x256xf32> to vector<2x64xf32>
    %141 = math.tanh %139 : vector<2x64xf32>
    %142 = arith.mulf %140, %141 : vector<2x64xf32>
    %143 = arith.truncf %142 : vector<2x64xf32> to vector<2x64xbf16>
    %cst_36 = arith.constant dense<0.000000e+00> : vector<2x256xf32>
    %144 = tpu.matmul %143, %6, %cst_36 {dimension_numbers = #tpu.dot_dimension_numbers<[1], [0], [0], [1], [0, 0, 1, 1], [], []>} : vector<2x64xbf16>, vector<64x256xbf16>, vector<2x256xf32> -> vector<2x256xf32>
    %c3_37 = arith.constant 3 : index
    %c0_38 = arith.constant 0 : index
    %c0_39 = arith.constant 0 : index
    %145 = vector.load %arg4[%c3_37, %c0_38, %c0_39] : memref<8x2x256xf32, #tpu.memory_space<vmem>>, vector<1x2x256xf32>
    %146 = vector.shape_cast %145 : vector<1x2x256xf32> to vector<2x256xf32>
    %147 = arith.addf %146, %123 : vector<2x256xf32>
    %148 = arith.negf %147 : vector<2x256xf32>
    %149 = math.exp %148 : vector<2x256xf32>
    %cst_40 = arith.constant 1.000000e+00 : f32
    %150 = vector.broadcast %cst_40 : f32 to vector<2x256xf32>
    %151 = arith.addf %150, %149 : vector<2x256xf32>
    %152 = arith.divf %150, %151 : vector<2x256xf32>
    %153 = vector.extract_strided_slice %147 {offsets = [0, 192], sizes = [2, 64], strides = [1, 1]} : vector<2x256xf32> to vector<2x64xf32>
    %154 = math.tanh %153 : vector<2x64xf32>
    %155 = vector.extract_strided_slice %152 {offsets = [0, 64], sizes = [2, 64], strides = [1, 1]} : vector<2x256xf32> to vector<2x64xf32>
    %156 = arith.mulf %155, %117 : vector<2x64xf32>
    %157 = vector.extract_strided_slice %152 {offsets = [0, 0], sizes = [2, 64], strides = [1, 1]} : vector<2x256xf32> to vector<2x64xf32>
    %158 = arith.mulf %157, %154 : vector<2x64xf32>
    %159 = arith.addf %156, %158 : vector<2x64xf32>
    %160 = vector.extract_strided_slice %152 {offsets = [0, 128], sizes = [2, 64], strides = [1, 1]} : vector<2x256xf32> to vector<2x64xf32>
    %161 = math.tanh %159 : vector<2x64xf32>
    %162 = arith.mulf %160, %161 : vector<2x64xf32>
    %163 = arith.truncf %162 : vector<2x64xf32> to vector<2x64xbf16>
    %cst_41 = arith.constant dense<0.000000e+00> : vector<2x512xf32>
    %164 = tpu.matmul %163, %5, %cst_41 {dimension_numbers = #tpu.dot_dimension_numbers<[1], [0], [0], [1], [0, 0, 1, 1], [], []>} : vector<2x64xbf16>, vector<64x512xbf16>, vector<2x512xf32> -> vector<2x512xf32>
    %165 = vector.extract_strided_slice %164 {offsets = [0, 0], sizes = [2, 256], strides = [1, 1]} : vector<2x512xf32> to vector<2x256xf32>
    %166 = vector.extract_strided_slice %164 {offsets = [0, 256], sizes = [2, 256], strides = [1, 1]} : vector<2x512xf32> to vector<2x256xf32>
    %167 = arith.addf %166, %144 : vector<2x256xf32>
    %168 = vector.broadcast %2 : vector<1x256xf32> to vector<2x256xf32>
    %169 = arith.addf %167, %168 : vector<2x256xf32>
    %170 = arith.negf %169 : vector<2x256xf32>
    %171 = math.exp %170 : vector<2x256xf32>
    %cst_42 = arith.constant 1.000000e+00 : f32
    %172 = vector.broadcast %cst_42 : f32 to vector<2x256xf32>
    %173 = arith.addf %172, %171 : vector<2x256xf32>
    %174 = arith.divf %172, %173 : vector<2x256xf32>
    %175 = vector.extract_strided_slice %169 {offsets = [0, 192], sizes = [2, 64], strides = [1, 1]} : vector<2x256xf32> to vector<2x64xf32>
    %176 = math.tanh %175 : vector<2x64xf32>
    %177 = vector.extract_strided_slice %174 {offsets = [0, 64], sizes = [2, 64], strides = [1, 1]} : vector<2x256xf32> to vector<2x64xf32>
    %178 = arith.mulf %177, %139 : vector<2x64xf32>
    %179 = vector.extract_strided_slice %174 {offsets = [0, 0], sizes = [2, 64], strides = [1, 1]} : vector<2x256xf32> to vector<2x64xf32>
    %180 = arith.mulf %179, %176 : vector<2x64xf32>
    %181 = arith.addf %178, %180 : vector<2x64xf32>
    %182 = vector.extract_strided_slice %174 {offsets = [0, 128], sizes = [2, 64], strides = [1, 1]} : vector<2x256xf32> to vector<2x64xf32>
    %183 = math.tanh %181 : vector<2x64xf32>
    %184 = arith.mulf %182, %183 : vector<2x64xf32>
    %185 = arith.truncf %184 : vector<2x64xf32> to vector<2x64xbf16>
    %cst_43 = arith.constant dense<0.000000e+00> : vector<2x256xf32>
    %186 = tpu.matmul %185, %6, %cst_43 {dimension_numbers = #tpu.dot_dimension_numbers<[1], [0], [0], [1], [0, 0, 1, 1], [], []>} : vector<2x64xbf16>, vector<64x256xbf16>, vector<2x256xf32> -> vector<2x256xf32>
    %c4_44 = arith.constant 4 : index
    %c0_45 = arith.constant 0 : index
    %c0_46 = arith.constant 0 : index
    %187 = vector.load %arg4[%c4_44, %c0_45, %c0_46] : memref<8x2x256xf32, #tpu.memory_space<vmem>>, vector<1x2x256xf32>
    %188 = vector.shape_cast %187 : vector<1x2x256xf32> to vector<2x256xf32>
    %189 = arith.addf %188, %165 : vector<2x256xf32>
    %190 = arith.negf %189 : vector<2x256xf32>
    %191 = math.exp %190 : vector<2x256xf32>
    %cst_47 = arith.constant 1.000000e+00 : f32
    %192 = vector.broadcast %cst_47 : f32 to vector<2x256xf32>
    %193 = arith.addf %192, %191 : vector<2x256xf32>
    %194 = arith.divf %192, %193 : vector<2x256xf32>
    %195 = vector.extract_strided_slice %189 {offsets = [0, 192], sizes = [2, 64], strides = [1, 1]} : vector<2x256xf32> to vector<2x64xf32>
    %196 = math.tanh %195 : vector<2x64xf32>
    %197 = vector.extract_strided_slice %194 {offsets = [0, 64], sizes = [2, 64], strides = [1, 1]} : vector<2x256xf32> to vector<2x64xf32>
    %198 = arith.mulf %197, %159 : vector<2x64xf32>
    %199 = vector.extract_strided_slice %194 {offsets = [0, 0], sizes = [2, 64], strides = [1, 1]} : vector<2x256xf32> to vector<2x64xf32>
    %200 = arith.mulf %199, %196 : vector<2x64xf32>
    %201 = arith.addf %198, %200 : vector<2x64xf32>
    %202 = vector.extract_strided_slice %194 {offsets = [0, 128], sizes = [2, 64], strides = [1, 1]} : vector<2x256xf32> to vector<2x64xf32>
    %203 = math.tanh %201 : vector<2x64xf32>
    %204 = arith.mulf %202, %203 : vector<2x64xf32>
    %205 = arith.truncf %204 : vector<2x64xf32> to vector<2x64xbf16>
    %cst_48 = arith.constant dense<0.000000e+00> : vector<2x512xf32>
    %206 = tpu.matmul %205, %5, %cst_48 {dimension_numbers = #tpu.dot_dimension_numbers<[1], [0], [0], [1], [0, 0, 1, 1], [], []>} : vector<2x64xbf16>, vector<64x512xbf16>, vector<2x512xf32> -> vector<2x512xf32>
    %207 = vector.extract_strided_slice %206 {offsets = [0, 0], sizes = [2, 256], strides = [1, 1]} : vector<2x512xf32> to vector<2x256xf32>
    %208 = vector.extract_strided_slice %206 {offsets = [0, 256], sizes = [2, 256], strides = [1, 1]} : vector<2x512xf32> to vector<2x256xf32>
    %209 = arith.addf %208, %186 : vector<2x256xf32>
    %210 = vector.broadcast %2 : vector<1x256xf32> to vector<2x256xf32>
    %211 = arith.addf %209, %210 : vector<2x256xf32>
    %212 = arith.negf %211 : vector<2x256xf32>
    %213 = math.exp %212 : vector<2x256xf32>
    %cst_49 = arith.constant 1.000000e+00 : f32
    %214 = vector.broadcast %cst_49 : f32 to vector<2x256xf32>
    %215 = arith.addf %214, %213 : vector<2x256xf32>
    %216 = arith.divf %214, %215 : vector<2x256xf32>
    %217 = vector.extract_strided_slice %211 {offsets = [0, 192], sizes = [2, 64], strides = [1, 1]} : vector<2x256xf32> to vector<2x64xf32>
    %218 = math.tanh %217 : vector<2x64xf32>
    %219 = vector.extract_strided_slice %216 {offsets = [0, 64], sizes = [2, 64], strides = [1, 1]} : vector<2x256xf32> to vector<2x64xf32>
    %220 = arith.mulf %219, %181 : vector<2x64xf32>
    %221 = vector.extract_strided_slice %216 {offsets = [0, 0], sizes = [2, 64], strides = [1, 1]} : vector<2x256xf32> to vector<2x64xf32>
    %222 = arith.mulf %221, %218 : vector<2x64xf32>
    %223 = arith.addf %220, %222 : vector<2x64xf32>
    %224 = vector.extract_strided_slice %216 {offsets = [0, 128], sizes = [2, 64], strides = [1, 1]} : vector<2x256xf32> to vector<2x64xf32>
    %225 = math.tanh %223 : vector<2x64xf32>
    %226 = arith.mulf %224, %225 : vector<2x64xf32>
    %227 = arith.truncf %226 : vector<2x64xf32> to vector<2x64xbf16>
    %cst_50 = arith.constant dense<0.000000e+00> : vector<2x256xf32>
    %228 = tpu.matmul %227, %6, %cst_50 {dimension_numbers = #tpu.dot_dimension_numbers<[1], [0], [0], [1], [0, 0, 1, 1], [], []>} : vector<2x64xbf16>, vector<64x256xbf16>, vector<2x256xf32> -> vector<2x256xf32>
    %c5 = arith.constant 5 : index
    %c0_51 = arith.constant 0 : index
    %c0_52 = arith.constant 0 : index
    %229 = vector.load %arg4[%c5, %c0_51, %c0_52] : memref<8x2x256xf32, #tpu.memory_space<vmem>>, vector<1x2x256xf32>
    %230 = vector.shape_cast %229 : vector<1x2x256xf32> to vector<2x256xf32>
    %231 = arith.addf %230, %207 : vector<2x256xf32>
    %232 = arith.negf %231 : vector<2x256xf32>
    %233 = math.exp %232 : vector<2x256xf32>
    %cst_53 = arith.constant 1.000000e+00 : f32
    %234 = vector.broadcast %cst_53 : f32 to vector<2x256xf32>
    %235 = arith.addf %234, %233 : vector<2x256xf32>
    %236 = arith.divf %234, %235 : vector<2x256xf32>
    %237 = vector.extract_strided_slice %231 {offsets = [0, 192], sizes = [2, 64], strides = [1, 1]} : vector<2x256xf32> to vector<2x64xf32>
    %238 = math.tanh %237 : vector<2x64xf32>
    %239 = vector.extract_strided_slice %236 {offsets = [0, 64], sizes = [2, 64], strides = [1, 1]} : vector<2x256xf32> to vector<2x64xf32>
    %240 = arith.mulf %239, %201 : vector<2x64xf32>
    %241 = vector.extract_strided_slice %236 {offsets = [0, 0], sizes = [2, 64], strides = [1, 1]} : vector<2x256xf32> to vector<2x64xf32>
    %242 = arith.mulf %241, %238 : vector<2x64xf32>
    %243 = arith.addf %240, %242 : vector<2x64xf32>
    %244 = vector.extract_strided_slice %236 {offsets = [0, 128], sizes = [2, 64], strides = [1, 1]} : vector<2x256xf32> to vector<2x64xf32>
    %245 = math.tanh %243 : vector<2x64xf32>
    %246 = arith.mulf %244, %245 : vector<2x64xf32>
    %247 = arith.truncf %246 : vector<2x64xf32> to vector<2x64xbf16>
    %cst_54 = arith.constant dense<0.000000e+00> : vector<2x512xf32>
    %248 = tpu.matmul %247, %5, %cst_54 {dimension_numbers = #tpu.dot_dimension_numbers<[1], [0], [0], [1], [0, 0, 1, 1], [], []>} : vector<2x64xbf16>, vector<64x512xbf16>, vector<2x512xf32> -> vector<2x512xf32>
    %249 = vector.extract_strided_slice %248 {offsets = [0, 0], sizes = [2, 256], strides = [1, 1]} : vector<2x512xf32> to vector<2x256xf32>
    %250 = vector.extract_strided_slice %248 {offsets = [0, 256], sizes = [2, 256], strides = [1, 1]} : vector<2x512xf32> to vector<2x256xf32>
    %251 = arith.addf %250, %228 : vector<2x256xf32>
    %252 = vector.broadcast %2 : vector<1x256xf32> to vector<2x256xf32>
    %253 = arith.addf %251, %252 : vector<2x256xf32>
    %254 = arith.negf %253 : vector<2x256xf32>
    %255 = math.exp %254 : vector<2x256xf32>
    %cst_55 = arith.constant 1.000000e+00 : f32
    %256 = vector.broadcast %cst_55 : f32 to vector<2x256xf32>
    %257 = arith.addf %256, %255 : vector<2x256xf32>
    %258 = arith.divf %256, %257 : vector<2x256xf32>
    %259 = vector.extract_strided_slice %253 {offsets = [0, 192], sizes = [2, 64], strides = [1, 1]} : vector<2x256xf32> to vector<2x64xf32>
    %260 = math.tanh %259 : vector<2x64xf32>
    %261 = vector.extract_strided_slice %258 {offsets = [0, 64], sizes = [2, 64], strides = [1, 1]} : vector<2x256xf32> to vector<2x64xf32>
    %262 = arith.mulf %261, %223 : vector<2x64xf32>
    %263 = vector.extract_strided_slice %258 {offsets = [0, 0], sizes = [2, 64], strides = [1, 1]} : vector<2x256xf32> to vector<2x64xf32>
    %264 = arith.mulf %263, %260 : vector<2x64xf32>
    %265 = arith.addf %262, %264 : vector<2x64xf32>
    %266 = vector.extract_strided_slice %258 {offsets = [0, 128], sizes = [2, 64], strides = [1, 1]} : vector<2x256xf32> to vector<2x64xf32>
    %267 = math.tanh %265 : vector<2x64xf32>
    %268 = arith.mulf %266, %267 : vector<2x64xf32>
    %269 = arith.truncf %268 : vector<2x64xf32> to vector<2x64xbf16>
    %cst_56 = arith.constant dense<0.000000e+00> : vector<2x256xf32>
    %270 = tpu.matmul %269, %6, %cst_56 {dimension_numbers = #tpu.dot_dimension_numbers<[1], [0], [0], [1], [0, 0, 1, 1], [], []>} : vector<2x64xbf16>, vector<64x256xbf16>, vector<2x256xf32> -> vector<2x256xf32>
    %c6 = arith.constant 6 : index
    %c0_57 = arith.constant 0 : index
    %c0_58 = arith.constant 0 : index
    %271 = vector.load %arg4[%c6, %c0_57, %c0_58] : memref<8x2x256xf32, #tpu.memory_space<vmem>>, vector<1x2x256xf32>
    %272 = vector.shape_cast %271 : vector<1x2x256xf32> to vector<2x256xf32>
    %273 = arith.addf %272, %249 : vector<2x256xf32>
    %274 = arith.negf %273 : vector<2x256xf32>
    %275 = math.exp %274 : vector<2x256xf32>
    %cst_59 = arith.constant 1.000000e+00 : f32
    %276 = vector.broadcast %cst_59 : f32 to vector<2x256xf32>
    %277 = arith.addf %276, %275 : vector<2x256xf32>
    %278 = arith.divf %276, %277 : vector<2x256xf32>
    %279 = vector.extract_strided_slice %273 {offsets = [0, 192], sizes = [2, 64], strides = [1, 1]} : vector<2x256xf32> to vector<2x64xf32>
    %280 = math.tanh %279 : vector<2x64xf32>
    %281 = vector.extract_strided_slice %278 {offsets = [0, 64], sizes = [2, 64], strides = [1, 1]} : vector<2x256xf32> to vector<2x64xf32>
    %282 = arith.mulf %281, %243 : vector<2x64xf32>
    %283 = vector.extract_strided_slice %278 {offsets = [0, 0], sizes = [2, 64], strides = [1, 1]} : vector<2x256xf32> to vector<2x64xf32>
    %284 = arith.mulf %283, %280 : vector<2x64xf32>
    %285 = arith.addf %282, %284 : vector<2x64xf32>
    %286 = vector.extract_strided_slice %278 {offsets = [0, 128], sizes = [2, 64], strides = [1, 1]} : vector<2x256xf32> to vector<2x64xf32>
    %287 = math.tanh %285 : vector<2x64xf32>
    %288 = arith.mulf %286, %287 : vector<2x64xf32>
    %289 = arith.truncf %288 : vector<2x64xf32> to vector<2x64xbf16>
    %cst_60 = arith.constant dense<0.000000e+00> : vector<2x512xf32>
    %290 = tpu.matmul %289, %5, %cst_60 {dimension_numbers = #tpu.dot_dimension_numbers<[1], [0], [0], [1], [0, 0, 1, 1], [], []>} : vector<2x64xbf16>, vector<64x512xbf16>, vector<2x512xf32> -> vector<2x512xf32>
    %291 = vector.extract_strided_slice %290 {offsets = [0, 0], sizes = [2, 256], strides = [1, 1]} : vector<2x512xf32> to vector<2x256xf32>
    %292 = vector.extract_strided_slice %290 {offsets = [0, 256], sizes = [2, 256], strides = [1, 1]} : vector<2x512xf32> to vector<2x256xf32>
    %293 = arith.addf %292, %270 : vector<2x256xf32>
    %294 = vector.broadcast %2 : vector<1x256xf32> to vector<2x256xf32>
    %295 = arith.addf %293, %294 : vector<2x256xf32>
    %296 = arith.negf %295 : vector<2x256xf32>
    %297 = math.exp %296 : vector<2x256xf32>
    %cst_61 = arith.constant 1.000000e+00 : f32
    %298 = vector.broadcast %cst_61 : f32 to vector<2x256xf32>
    %299 = arith.addf %298, %297 : vector<2x256xf32>
    %300 = arith.divf %298, %299 : vector<2x256xf32>
    %301 = vector.extract_strided_slice %295 {offsets = [0, 192], sizes = [2, 64], strides = [1, 1]} : vector<2x256xf32> to vector<2x64xf32>
    %302 = math.tanh %301 : vector<2x64xf32>
    %303 = vector.extract_strided_slice %300 {offsets = [0, 64], sizes = [2, 64], strides = [1, 1]} : vector<2x256xf32> to vector<2x64xf32>
    %304 = arith.mulf %303, %265 : vector<2x64xf32>
    %305 = vector.extract_strided_slice %300 {offsets = [0, 0], sizes = [2, 64], strides = [1, 1]} : vector<2x256xf32> to vector<2x64xf32>
    %306 = arith.mulf %305, %302 : vector<2x64xf32>
    %307 = arith.addf %304, %306 : vector<2x64xf32>
    %308 = vector.extract_strided_slice %300 {offsets = [0, 128], sizes = [2, 64], strides = [1, 1]} : vector<2x256xf32> to vector<2x64xf32>
    %309 = math.tanh %307 : vector<2x64xf32>
    %310 = arith.mulf %308, %309 : vector<2x64xf32>
    %311 = arith.truncf %310 : vector<2x64xf32> to vector<2x64xbf16>
    %cst_62 = arith.constant dense<0.000000e+00> : vector<2x256xf32>
    %312 = tpu.matmul %311, %6, %cst_62 {dimension_numbers = #tpu.dot_dimension_numbers<[1], [0], [0], [1], [0, 0, 1, 1], [], []>} : vector<2x64xbf16>, vector<64x256xbf16>, vector<2x256xf32> -> vector<2x256xf32>
    %c7 = arith.constant 7 : index
    %c0_63 = arith.constant 0 : index
    %c0_64 = arith.constant 0 : index
    %313 = vector.load %arg4[%c7, %c0_63, %c0_64] : memref<8x2x256xf32, #tpu.memory_space<vmem>>, vector<1x2x256xf32>
    %314 = vector.shape_cast %313 : vector<1x2x256xf32> to vector<2x256xf32>
    %315 = arith.addf %314, %291 : vector<2x256xf32>
    %316 = arith.negf %315 : vector<2x256xf32>
    %317 = math.exp %316 : vector<2x256xf32>
    %cst_65 = arith.constant 1.000000e+00 : f32
    %318 = vector.broadcast %cst_65 : f32 to vector<2x256xf32>
    %319 = arith.addf %318, %317 : vector<2x256xf32>
    %320 = arith.divf %318, %319 : vector<2x256xf32>
    %321 = vector.extract_strided_slice %315 {offsets = [0, 192], sizes = [2, 64], strides = [1, 1]} : vector<2x256xf32> to vector<2x64xf32>
    %322 = math.tanh %321 : vector<2x64xf32>
    %323 = vector.extract_strided_slice %320 {offsets = [0, 64], sizes = [2, 64], strides = [1, 1]} : vector<2x256xf32> to vector<2x64xf32>
    %324 = arith.mulf %323, %285 : vector<2x64xf32>
    %325 = vector.extract_strided_slice %320 {offsets = [0, 0], sizes = [2, 64], strides = [1, 1]} : vector<2x256xf32> to vector<2x64xf32>
    %326 = arith.mulf %325, %322 : vector<2x64xf32>
    %327 = arith.addf %324, %326 : vector<2x64xf32>
    %328 = vector.extract_strided_slice %320 {offsets = [0, 128], sizes = [2, 64], strides = [1, 1]} : vector<2x256xf32> to vector<2x64xf32>
    %329 = math.tanh %327 : vector<2x64xf32>
    %330 = arith.mulf %328, %329 : vector<2x64xf32>
    %331 = arith.truncf %330 : vector<2x64xf32> to vector<2x64xbf16>
    %cst_66 = arith.constant dense<0.000000e+00> : vector<2x512xf32>
    %332 = tpu.matmul %331, %5, %cst_66 {dimension_numbers = #tpu.dot_dimension_numbers<[1], [0], [0], [1], [0, 0, 1, 1], [], []>} : vector<2x64xbf16>, vector<64x512xbf16>, vector<2x512xf32> -> vector<2x512xf32>
    %333 = vector.extract_strided_slice %332 {offsets = [0, 256], sizes = [2, 256], strides = [1, 1]} : vector<2x512xf32> to vector<2x256xf32>
    %334 = arith.addf %333, %312 : vector<2x256xf32>
    %335 = vector.broadcast %2 : vector<1x256xf32> to vector<2x256xf32>
    %336 = arith.addf %334, %335 : vector<2x256xf32>
    %337 = arith.negf %336 : vector<2x256xf32>
    %338 = math.exp %337 : vector<2x256xf32>
    %cst_67 = arith.constant 1.000000e+00 : f32
    %339 = vector.broadcast %cst_67 : f32 to vector<2x256xf32>
    %340 = arith.addf %339, %338 : vector<2x256xf32>
    %341 = arith.divf %339, %340 : vector<2x256xf32>
    %342 = vector.extract_strided_slice %336 {offsets = [0, 192], sizes = [2, 64], strides = [1, 1]} : vector<2x256xf32> to vector<2x64xf32>
    %343 = math.tanh %342 : vector<2x64xf32>
    %344 = vector.extract_strided_slice %341 {offsets = [0, 64], sizes = [2, 64], strides = [1, 1]} : vector<2x256xf32> to vector<2x64xf32>
    %345 = arith.mulf %344, %307 : vector<2x64xf32>
    %346 = vector.extract_strided_slice %341 {offsets = [0, 0], sizes = [2, 64], strides = [1, 1]} : vector<2x256xf32> to vector<2x64xf32>
    %347 = arith.mulf %346, %343 : vector<2x64xf32>
    %348 = arith.addf %345, %347 : vector<2x64xf32>
    %349 = vector.extract_strided_slice %341 {offsets = [0, 128], sizes = [2, 64], strides = [1, 1]} : vector<2x256xf32> to vector<2x64xf32>
    %350 = math.tanh %348 : vector<2x64xf32>
    %351 = arith.mulf %349, %350 : vector<2x64xf32>
    %352 = vector.broadcast %3 : vector<1x64xf32> to vector<2x64xf32>
    %353 = arith.mulf %351, %352 : vector<2x64xf32>
    %cst_68 = arith.constant dense<0.000000e+00> : vector<2xf32>
    %354 = vector.multi_reduction <add>, %353, %cst_68 [1] : vector<2x64xf32> to vector<2xf32>
    %355 = vector.shape_cast %354 : vector<2xf32> to vector<2x1xf32>
    %356 = vector.broadcast %4 : vector<1x1xf32> to vector<2x1xf32>
    %357 = arith.addf %355, %356 : vector<2x1xf32>
    %c0_69 = arith.constant 0 : index
    %c0_70 = arith.constant 0 : index
    %358 = vector.load %arg3[%c0_69, %c0_70] : memref<2x1xf32, #tpu.memory_space<vmem>>, vector<2x1xf32>
    tpu.vector_store %arg3[%c0_69, %c0_70], %357 {strides = array<i32>} : memref<2x1xf32, #tpu.memory_space<vmem>>, vector<2x1xf32>,
    return
  }
}

</mosaic_0001>

<llo_original>
// kernel: tpu_custom_call.1
$region0: #{tpu_custom_call.1}
  #allocation0 [shape = 'u32[]', space=smem, size = 0x4, offset = 0x4, fixed_abs, tag = 'smem constant byte address 0x4 - core index']
  #allocation1 [shape = 'u32[144,128]{1,0:T(1,128)}', space=vmem, size = 0x12000, scoped, tag = 'internal scratch']
  #allocation2 [shape = 'f32[8,2,256]{2,1,0:T(2,128)}', space=vmem, size = 0x4000, scoped, tag = 'scratch operand']
  %s0 = inlined_call_operand.vmem [shape: f32[8,2,1], index: 0, kind: input, shape index: {}]
  %s1 = inlined_call_operand.vmem [shape: f32[8,256], index: 1, kind: input, shape index: {}]
  %s2 = inlined_call_operand.hbm [shape: bf16[64,768], index: 2, kind: input, shape index: {}]
  %s3 = inlined_call_operand.vmem [shape: f32[2,1], index: 3, kind: output, shape index: {}]
  %s4 = sld [smem:[#allocation0]]
  $region26: #{tpu_custom_call.1} parent=0
    _
  %s6 = ssub.s32 1, %s4
  %s7 = scalar_select 0, %s6, %s4
  $region1: #{tpu_custom_call.1} parent=0
    #allocation3 [shape = 'u8[98304]{0}', space=vmem, size = 0x18000, scoped, tag = 'input window, operand 2, single buffered']
    #allocation4 [shape = 's32[1]{0}', space=sflag, size = 0x4, scoped, tag = 'scoped memory for tpu_custom_call.1']
    %8 = vsyncpa [#allocation4], 0
    // Predicated region
    $region2: #{tpu_custom_call.1} parent=1 // pred_check
      _
    $region3: #{tpu_custom_call.1} parent=1 // pred_check_branch
      %10 = sbr.rel (0) target = $region5
    $region4: #{tpu_custom_call.1} parent=1 // pred_region
      _
    $region5: #{tpu_custom_call.1} parent=1 // pred_fallthru
      _
    // Predicated region
    $region6: #{tpu_custom_call.1} parent=1 // pred_check
      _
    $region7: #{tpu_custom_call.1} parent=1 // pred_check_branch
      %12 = sbr.rel (0) target = $region9
    $region8: #{tpu_custom_call.1} parent=1 // pred_region
      _
    $region9: #{tpu_custom_call.1} parent=1 // pred_fallthru
      _
    // Predicated region
    $region10: #{tpu_custom_call.1} parent=1 // pred_check
      _
    $region11: #{tpu_custom_call.1} parent=1 // pred_check_branch
      %14 = sbr.rel (0) target = $region13
    $region12: #{tpu_custom_call.1} parent=1 // pred_region
      %s16 = ssub.s32 3072, 3072
      %17 = vsyncadd [#allocation4], %s16
      %s18 = sshll.u32 [#allocation3], 4
      %s19 = int_to_ptr.vmem [resolvable:$true] %s18
      %24 = dma.hbm_to_vmem [thread:$0]  %s2, 3072, %s19, [#allocation4], 384, 384, 24
    $region13: #{tpu_custom_call.1} parent=1 // pred_fallthru
      _
    // Predicated region
    $region14: #{tpu_custom_call.1} parent=1 // pred_check
      _
    $region15: #{tpu_custom_call.1} parent=1 // pred_check_branch
      %26 = sbr.rel (0) target = $region17
    $region16: #{tpu_custom_call.1} parent=1 // pred_region
      %27 = dma.done [#allocation4], 3072
    $region17: #{tpu_custom_call.1} parent=1 // pred_fallthru
      _
    %v29 = vld [vmem:[%s1] ss:$8 sm:$0x3]
    %s30 = scalar_lea.vmem %s1, 1
    %v31 = vld [vmem:[%s30] ss:$8 sm:$0x3]
    %s32 = scalar_lea.vmem %s1, 2
    %v33 = vld [vmem:[%s32] ss:$8 sm:$0x3]
    %v34 = vld [vmem:[%s1 + $0x3] ss:$0 sm:$0xff]
    %v35 = vld [vmem:[%s1 + $0x4] ss:$0 sm:$0xff]
    %v36 = vld [vmem:[#allocation3] sm:$0xff]
    %v37 = vld [vmem:[#allocation3 + $0x8] sm:$0xff]
    %v38 = vld [vmem:[#allocation3 + $0x18] sm:$0xff]
    %v39 = vld [vmem:[#allocation3 + $0x20] sm:$0xff]
    %v40 = vld [vmem:[#allocation3 + $0x30] sm:$0xff]
    %v41 = vld [vmem:[#allocation3 + $0x38] sm:$0xff]
    %v42 = vld [vmem:[#allocation3 + $0x48] sm:$0xff]
    %v43 = vld [vmem:[#allocation3 + $0x50] sm:$0xff]
    %v44 = vld [vmem:[#allocation3 + $0x60] sm:$0xff]
    %v45 = vld [vmem:[#allocation3 + $0x68] sm:$0xff]
    %v46 = vld [vmem:[#allocation3 + $0x78] sm:$0xff]
    %v47 = vld [vmem:[#allocation3 + $0x80] sm:$0xff]
    %v48 = vld [vmem:[#allocation3 + $0x90] sm:$0xff]
    %v49 = vld [vmem:[#allocation3 + $0x98] sm:$0xff]
    %v50 = vld [vmem:[#allocation3 + $0xa8] sm:$0xff]
    %v51 = vld [vmem:[#allocation3 + $0xb0] sm:$0xff]
    %v52 = vld [vmem:[#allocation3 + $0x10] sm:$0xff]
    %v53 = vld [vmem:[#allocation3 + $0x28] sm:$0xff]
    %v54 = vld [vmem:[#allocation3 + $0x40] sm:$0xff]
    %v55 = vld [vmem:[#allocation3 + $0x58] sm:$0xff]
    %v56 = vld [vmem:[#allocation3 + $0x70] sm:$0xff]
    %v57 = vld [vmem:[#allocation3 + $0x88] sm:$0xff]
    %v58 = vld [vmem:[#allocation3 + $0xa0] sm:$0xff]
    %v59 = vld [vmem:[#allocation3 + $0xb8] sm:$0xff]
    %v60 = vld [vmem:[%s0] sm:$0x3]
    %v61 = vld [vmem:[%s0 + $0x2] sm:$0x3]
    %v62 = vld [vmem:[%s0 + $0x4] sm:$0x3]
    %v63 = vld [vmem:[%s0 + $0x6] sm:$0x3]
    %v64 = vld [vmem:[%s0 + $0x8] sm:$0x3]
    %v65 = vld [vmem:[%s0 + $0xa] sm:$0x3]
    %v66 = vld [vmem:[%s0 + $0xc] sm:$0x3]
    %v67 = vld [vmem:[%s0 + $0xe] sm:$0x3]
    %69 = vset.pattern.permute.xlu0 0
    %70 = vperm.xlu0 %69, %v60
    %v71 = vpop.permute.xlu0 %70
    %74 = vset.pattern.permute.xlu0 0
    %75 = vperm.xlu0 %74, %v61
    %v76 = vpop.permute.xlu0 %75
    %79 = vset.pattern.permute.xlu0 0
    %80 = vperm.xlu0 %79, %v62
    %v81 = vpop.permute.xlu0 %80
    %84 = vset.pattern.permute.xlu0 0
    %85 = vperm.xlu0 %84, %v63
    %v86 = vpop.permute.xlu0 %85
    %89 = vset.pattern.permute.xlu0 0
    %90 = vperm.xlu0 %89, %v64
    %v91 = vpop.permute.xlu0 %90
    %94 = vset.pattern.permute.xlu0 0
    %95 = vperm.xlu0 %94, %v65
    %v96 = vpop.permute.xlu0 %95
    %99 = vset.pattern.permute.xlu0 0
    %100 = vperm.xlu0 %99, %v66
    %v101 = vpop.permute.xlu0 %100
    %104 = vset.pattern.permute.xlu0 0
    %105 = vperm.xlu0 %104, %v67
    %v106 = vpop.permute.xlu0 %105
    %v109 = vlaneseq
    %v110 = vshrl.u32 %v109, 7
    %v111 = vsub.s32 0, %v110
    %v112 = vrot.slane %v29, %v111
    %v113 = vlaneseq
    %v114 = vshrl.u32 %v113, 7
    %v115 = vsub.s32 1, %v114
    %v116 = vrot.slane %v29, %v115
    %v119 = vmul.f32 %v71, %v112
    %v120 = vmul.f32 %v71, %v116
    %v121 = vmul.f32 %v76, %v112
    %v122 = vmul.f32 %v76, %v116
    %v123 = vmul.f32 %v81, %v112
    %v124 = vmul.f32 %v81, %v116
    %v125 = vmul.f32 %v86, %v112
    %v126 = vmul.f32 %v86, %v116
    %v127 = vmul.f32 %v91, %v112
    %v128 = vmul.f32 %v91, %v116
    %v129 = vmul.f32 %v96, %v112
    %v130 = vmul.f32 %v96, %v116
    %v131 = vmul.f32 %v101, %v112
    %v132 = vmul.f32 %v101, %v116
    %v133 = vmul.f32 %v106, %v112
    %v134 = vmul.f32 %v106, %v116
    %v136 = vlaneseq
    %v137 = vshrl.u32 %v136, 7
    %v138 = vsub.s32 0, %v137
    %v139 = vrot.slane %v31, %v138
    %v140 = vlaneseq
    %v141 = vshrl.u32 %v140, 7
    %v142 = vsub.s32 1, %v141
    %v143 = vrot.slane %v31, %v142
    %v146 = vadd.f32 %v119, %v139
    %v147 = vadd.f32 %v120, %v143
    %v148 = vadd.f32 %v121, %v139
    %v149 = vadd.f32 %v122, %v143
    %v150 = vadd.f32 %v123, %v139
    %v151 = vadd.f32 %v124, %v143
    %v152 = vadd.f32 %v125, %v139
    %v153 = vadd.f32 %v126, %v143
    %v154 = vadd.f32 %v127, %v139
    %v155 = vadd.f32 %v128, %v143
    %v156 = vadd.f32 %v129, %v139
    %v157 = vadd.f32 %v130, %v143
    %v158 = vadd.f32 %v131, %v139
    %v159 = vadd.f32 %v132, %v143
    %v160 = vadd.f32 %v133, %v139
    %v161 = vadd.f32 %v134, %v143
    %v178 = vcombine.low %v146, %v147
    %v180 = vunpack.c.l.s4 1983009808
    %v181 = vunpack.c.0.s8 %v180
    %v182 = vlaneseq
    %v183 = vshrl.u32 %v182, 7
    %v184 = vsub.s32 %v181, %v183
    %v185 = vrot.slane %v178, %v184
    %v186 = vcombine.low %v148, %v149
    %v188 = vunpack.c.l.s4 1983009808
    %v189 = vunpack.c.0.s8 %v188
    %v190 = vlaneseq
    %v191 = vshrl.u32 %v190, 7
    %v192 = vsub.s32 %v189, %v191
    %v193 = vrot.slane %v186, %v192
    %v194 = vcombine.low %v150, %v151
    %v196 = vunpack.c.l.s4 1983009808
    %v197 = vunpack.c.0.s8 %v196
    %v198 = vlaneseq
    %v199 = vshrl.u32 %v198, 7
    %v200 = vsub.s32 %v197, %v199
    %v201 = vrot.slane %v194, %v200
    %v202 = vcombine.low %v152, %v153
    %v204 = vunpack.c.l.s4 1983009808
    %v205 = vunpack.c.0.s8 %v204
    %v206 = vlaneseq
    %v207 = vshrl.u32 %v206, 7
    %v208 = vsub.s32 %v205, %v207
    %v209 = vrot.slane %v202, %v208
    %v210 = vcombine.low %v154, %v155
    %v212 = vunpack.c.l.s4 1983009808
    %v213 = vunpack.c.0.s8 %v212
    %v214 = vlaneseq
    %v215 = vshrl.u32 %v214, 7
    %v216 = vsub.s32 %v213, %v215
    %v217 = vrot.slane %v210, %v216
    %v218 = vcombine.low %v156, %v157
    %v220 = vunpack.c.l.s4 1983009808
    %v221 = vunpack.c.0.s8 %v220
    %v222 = vlaneseq
    %v223 = vshrl.u32 %v222, 7
    %v224 = vsub.s32 %v221, %v223
    %v225 = vrot.slane %v218, %v224
    %v226 = vcombine.low %v158, %v159
    %v228 = vunpack.c.l.s4 1983009808
    %v229 = vunpack.c.0.s8 %v228
    %v230 = vlaneseq
    %v231 = vshrl.u32 %v230, 7
    %v232 = vsub.s32 %v229, %v231
    %v233 = vrot.slane %v226, %v232
    %v234 = vcombine.low %v160, %v161
    %v236 = vunpack.c.l.s4 1983009808
    %v237 = vunpack.c.0.s8 %v236
    %v238 = vlaneseq
    %v239 = vshrl.u32 %v238, 7
    %v240 = vsub.s32 %v237, %v239
    %v241 = vrot.slane %v234, %v240
    %250 = vst [vmem:[#allocation2] sm:$0xf] %v185
    %251 = vst [vmem:[#allocation2 + $0x4] sm:$0xf] %v193
    %252 = vst [vmem:[#allocation2 + $0x8] sm:$0xf] %v201
    %253 = vst [vmem:[#allocation2 + $0xc] sm:$0xf] %v209
    %254 = vst [vmem:[#allocation2 + $0x10] sm:$0xf] %v217
    %255 = vst [vmem:[#allocation2 + $0x14] sm:$0xf] %v225
    %256 = vst [vmem:[#allocation2 + $0x18] sm:$0xf] %v233
    %257 = vst [vmem:[#allocation2 + $0x1c] sm:$0xf] %v241
    %v258 = vld [vmem:[#allocation2] sm:$0xf]
    %v259 = vadd.f32 %v258, 0.0
    %v260 = vxor.u32 %v259, 2147483648
    %v261 = vmul.f32 %v260, 1.442695
    %v262 = vpow.pop %v261
    %v263 = vadd.f32 %v262, 1.0
    %v264 = vrcp.pop %v263
    %v265 = vmul.f32 1.0, %v264
    %267 = vrot.lane.b32.xlu0 %v259, 64
    %v268 = vpop.permute.xlu0 %267
    %v269 = vrot.slane %v268, 2
    %v271 = vtanh.pop %v269
    %v272 = vmul.f32 %v265, 0.0
    %v273 = vmul.f32 %v265, %v271
    %275 = vrot.lane.b32.xlu0 %v273, 64
    %v276 = vpop.permute.xlu0 %275
    %v278 = vadd.f32 %v272, %v276
    %v279 = vtanh.pop %v278
    %v281 = vrot.slane %v265, 2
    %284 = vrot.lane.b32.xlu0 %v279, 64
    %v285 = vpop.permute.xlu0 %284
    %v287 = vmul.f32 %v281, %v285
    %v288 = vpack.c.bf16 %v287, %v287
    %v305 = vunpack.c.l.b16 %v36
    %v306 = vunpack.c.h.b16 %v36
    %v307 = vunpack.c.l.b16 %v37
    %v308 = vunpack.c.h.b16 %v37
    %v309 = vunpack.c.l.b16 %v38
    %v310 = vunpack.c.h.b16 %v38
    %v311 = vunpack.c.l.b16 %v39
    %v312 = vunpack.c.h.b16 %v39
    %v313 = vunpack.c.l.b16 %v40
    %v314 = vunpack.c.h.b16 %v40
    %v315 = vunpack.c.l.b16 %v41
    %v316 = vunpack.c.h.b16 %v41
    %v317 = vunpack.c.l.b16 %v42
    %v318 = vunpack.c.h.b16 %v42
    %v319 = vunpack.c.l.b16 %v43
    %v320 = vunpack.c.h.b16 %v43
    %v321 = vunpack.c.l.b16 %v44
    %v322 = vunpack.c.h.b16 %v44
    %v323 = vunpack.c.l.b16 %v45
    %v324 = vunpack.c.h.b16 %v45
    %v325 = vunpack.c.l.b16 %v46
    %v326 = vunpack.c.h.b16 %v46
    %v327 = vunpack.c.l.b16 %v47
    %v328 = vunpack.c.h.b16 %v47
    %v329 = vunpack.c.l.b16 %v48
    %v330 = vunpack.c.h.b16 %v48
    %v331 = vunpack.c.l.b16 %v49
    %v332 = vunpack.c.h.b16 %v49
    %v333 = vunpack.c.l.b16 %v50
    %v334 = vunpack.c.h.b16 %v50
    %v335 = vunpack.c.l.b16 %v51
    %v336 = vunpack.c.h.b16 %v51
    %v337 = vpack.c.b16 %v309, %v305
    %v338 = vpack.c.b16 %v310, %v306
    %v339 = vpack.c.b16 %v311, %v307
    %v340 = vpack.c.b16 %v312, %v308
    %v341 = vpack.c.b16 %v317, %v313
    %v342 = vpack.c.b16 %v318, %v314
    %v343 = vpack.c.b16 %v319, %v315
    %v344 = vpack.c.b16 %v320, %v316
    %v345 = vpack.c.b16 %v325, %v321
    %v346 = vpack.c.b16 %v326, %v322
    %v347 = vpack.c.b16 %v327, %v323
    %v348 = vpack.c.b16 %v328, %v324
    %v349 = vpack.c.b16 %v333, %v329
    %v350 = vpack.c.b16 %v334, %v330
    %v351 = vpack.c.b16 %v335, %v331
    %v352 = vpack.c.b16 %v336, %v332
    %vm369 = vcmask 523264
    %v371 = vsel %vm369, %v288, 0
    %373 = vmatprep.subr.bf16.mxu0 %v338
    %374 = vmatpush1.bf16.msra.mxu0 %v337
    %375 = vmatprep.subr.bf16.mxu0 %v342
    %376 = vmatpush1.bf16.msra.mxu0 %v341
    %377 = vmatprep.subr.bf16.mxu0 %v346
    %378 = vmatpush1.bf16.msra.mxu0 %v345
    %379 = vmatprep.subr.bf16.mxu0 %v350
    %380 = vmatpush1.bf16.msra.mxu0 %v349
    %381 = vmatprep.subr.bf16.mxu0 0
    %382 = vmatpush1.bf16.msra.mxu0 0
    %383 = vmatprep.subr.bf16.mxu0 0
    %384 = vmatpush1.bf16.msra.mxu0 0
    %385 = vmatprep.subr.bf16.mxu0 0
    %386 = vmatpush1.bf16.msra.mxu0 0
    %387 = vmatprep.subr.bf16.mxu0 0
    %388 = vmatpush1.bf16.msra.mxu0 0
    %389 = vmatprep.subr.bf16.mxu0 0
    %390 = vmatpush1.bf16.msra.mxu0 0
    %391 = vmatprep.subr.bf16.mxu0 0
    %392 = vmatpush1.bf16.msra.mxu0 0
    %393 = vmatprep.subr.bf16.mxu0 0
    %394 = vmatpush1.bf16.msra.mxu0 0
    %395 = vmatprep.subr.bf16.mxu0 0
    %396 = vmatpush1.bf16.msra.mxu0 0
    %397 = vmatprep.subr.bf16.mxu0 0
    %398 = vmatpush1.bf16.msra.mxu0 0
    %399 = vmatprep.subr.bf16.mxu0 0
    %400 = vmatpush1.bf16.msra.mxu0 0
    %401 = vmatprep.subr.bf16.mxu0 0
    %402 = vmatpush1.bf16.msra.mxu0 0
    %403 = vmatprep.subr.bf16.mxu0 0
    %404 = vmatpush1.bf16.msra.mxu0 0
    %405 = vmatprep.mubr.bf16.mxu0 0
    %406 = vmatmul.mubr.bf16.gmra.mrb[0].mxu0 %v371
    %v407 = vpop.f32.mrb[0].mxu0
    %v408 = vadd.f32 0.0, %v407
    %v409 = vpop.f32.mrb[0].mxu0
    %v410 = vadd.f32 0.0, %v409
    %v411 = vpop.f32.mrb[0].mxu0
    %v412 = vpop.f32.mrb[0].mxu0
    %413 = vdwg.mxu0
    %414 = vmatprep.subr.bf16.mxu0 %v340
    %415 = vmatpush1.bf16.msra.mxu0 %v339
    %416 = vmatprep.subr.bf16.mxu0 %v344
    %417 = vmatpush1.bf16.msra.mxu0 %v343
    %418 = vmatprep.subr.bf16.mxu0 %v348
    %419 = vmatpush1.bf16.msra.mxu0 %v347
    %420 = vmatprep.subr.bf16.mxu0 %v352
    %421 = vmatpush1.bf16.msra.mxu0 %v351
    %422 = vmatprep.subr.bf16.mxu0 0
    %423 = vmatpush1.bf16.msra.mxu0 0
    %424 = vmatprep.subr.bf16.mxu0 0
    %425 = vmatpush1.bf16.msra.mxu0 0
    %426 = vmatprep.subr.bf16.mxu0 0
    %427 = vmatpush1.bf16.msra.mxu0 0
    %428 = vmatprep.subr.bf16.mxu0 0
    %429 = vmatpush1.bf16.msra.mxu0 0
    %430 = vmatprep.subr.bf16.mxu0 0
    %431 = vmatpush1.bf16.msra.mxu0 0
    %432 = vmatprep.subr.bf16.mxu0 0
    %433 = vmatpush1.bf16.msra.mxu0 0
    %434 = vmatprep.subr.bf16.mxu0 0
    %435 = vmatpush1.bf16.msra.mxu0 0
    %436 = vmatprep.subr.bf16.mxu0 0
    %437 = vmatpush1.bf16.msra.mxu0 0
    %438 = vmatprep.subr.bf16.mxu0 0
    %439 = vmatpush1.bf16.msra.mxu0 0
    %440 = vmatprep.subr.bf16.mxu0 0
    %441 = vmatpush1.bf16.msra.mxu0 0
    %442 = vmatprep.subr.bf16.mxu0 0
    %443 = vmatpush1.bf16.msra.mxu0 0
    %444 = vmatprep.subr.bf16.mxu0 0
    %445 = vmatpush1.bf16.msra.mxu0 0
    %446 = vmatprep.mubr.bf16.mxu0 0
    %447 = vmatmul.mubr.bf16.gmra.mrb[0].mxu0 %v371
    %v448 = vpop.f32.mrb[0].mxu0
    %v449 = vadd.f32 0.0, %v448
    %v450 = vpop.f32.mrb[0].mxu0
    %v451 = vadd.f32 0.0, %v450
    %v452 = vpop.f32.mrb[0].mxu0
    %v453 = vpop.f32.mrb[0].mxu0
    %454 = vdwg.mxu0
    %v455 = vadd.f32 %v449, 0.0
    %v456 = vadd.f32 %v451, 0.0
    %v458 = vlaneseq
    %v459 = vshrl.u32 %v458, 7
    %v460 = vsub.s32 0, %v459
    %v461 = vrot.slane %v33, %v460
    %v462 = vlaneseq
    %v463 = vshrl.u32 %v462, 7
    %v464 = vsub.s32 1, %v463
    %v465 = vrot.slane %v33, %v464
    %v468 = vadd.f32 %v455, %v461
    %v469 = vadd.f32 %v456, %v465
    %v470 = vxor.u32 %v468, 2147483648
    %v471 = vxor.u32 %v469, 2147483648
    %v472 = vmul.f32 %v470, 1.442695
    %v473 = vpow.pop %v472
    %v474 = vmul.f32 %v471, 1.442695
    %v475 = vpow.pop %v474
    %v476 = vadd.f32 %v473, 1.0
    %v477 = vadd.f32 %v475, 1.0
    %v478 = vrcp.pop %v476
    %v479 = vmul.f32 1.0, %v478
    %v480 = vrcp.pop %v477
    %v481 = vmul.f32 1.0, %v480
    %v482 = vtanh.pop %v469
    %v483 = vmul.f32 %v479, 0.0
    %485 = vrot.lane.b32.xlu0 %v482, 64
    %v486 = vpop.permute.xlu0 %485
    %v488 = vmul.f32 %v479, %v486
    %490 = vrot.lane.b32.xlu0 %v488, 64
    %v491 = vpop.permute.xlu0 %490
    %v493 = vadd.f32 %v483, %v491
    %v494 = vtanh.pop %v493
    %496 = vrot.lane.b32.xlu0 %v494, 64
    %v497 = vpop.permute.xlu0 %496
    %v499 = vmul.f32 %v481, %v497
    %v500 = vpack.c.bf16 %v499, %v499
    %v509 = vunpack.c.l.b16 %v52
    %v510 = vunpack.c.h.b16 %v52
    %v511 = vunpack.c.l.b16 %v53
    %v512 = vunpack.c.h.b16 %v53
    %v513 = vunpack.c.l.b16 %v54
    %v514 = vunpack.c.h.b16 %v54
    %v515 = vunpack.c.l.b16 %v55
    %v516 = vunpack.c.h.b16 %v55
    %v517 = vunpack.c.l.b16 %v56
    %v518 = vunpack.c.h.b16 %v56
    %v519 = vunpack.c.l.b16 %v57
    %v520 = vunpack.c.h.b16 %v57
    %v521 = vunpack.c.l.b16 %v58
    %v522 = vunpack.c.h.b16 %v58
    %v523 = vunpack.c.l.b16 %v59
    %v524 = vunpack.c.h.b16 %v59
    %v525 = vpack.c.b16 %v511, %v509
    %v526 = vpack.c.b16 %v512, %v510
    %v527 = vpack.c.b16 %v515, %v513
    %v528 = vpack.c.b16 %v516, %v514
    %v529 = vpack.c.b16 %v519, %v517
    %v530 = vpack.c.b16 %v520, %v518
    %v531 = vpack.c.b16 %v523, %v521
    %v532 = vpack.c.b16 %v524, %v522
    %v542 = vsel %vm369, %v500, 0
    %544 = vmatprep.subr.bf16.mxu0 %v526
    %545 = vmatpush1.bf16.msra.mxu0 %v525
    %546 = vmatprep.subr.bf16.mxu0 %v528
    %547 = vmatpush1.bf16.msra.mxu0 %v527
    %548 = vmatprep.subr.bf16.mxu0 %v530
    %549 = vmatpush1.bf16.msra.mxu0 %v529
    %550 = vmatprep.subr.bf16.mxu0 %v532
    %551 = vmatpush1.bf16.msra.mxu0 %v531
    %552 = vmatprep.subr.bf16.mxu0 0
    %553 = vmatpush1.bf16.msra.mxu0 0
    %554 = vmatprep.subr.bf16.mxu0 0
    %555 = vmatpush1.bf16.msra.mxu0 0
    %556 = vmatprep.subr.bf16.mxu0 0
    %557 = vmatpush1.bf16.msra.mxu0 0
    %558 = vmatprep.subr.bf16.mxu0 0
    %559 = vmatpush1.bf16.msra.mxu0 0
    %560 = vmatprep.subr.bf16.mxu0 0
    %561 = vmatpush1.bf16.msra.mxu0 0
    %562 = vmatprep.subr.bf16.mxu0 0
    %563 = vmatpush1.bf16.msra.mxu0 0
    %564 = vmatprep.subr.bf16.mxu0 0
    %565 = vmatpush1.bf16.msra.mxu0 0
    %566 = vmatprep.subr.bf16.mxu0 0
    %567 = vmatpush1.bf16.msra.mxu0 0
    %568 = vmatprep.subr.bf16.mxu0 0
    %569 = vmatpush1.bf16.msra.mxu0 0
    %570 = vmatprep.subr.bf16.mxu0 0
    %571 = vmatpush1.bf16.msra.mxu0 0
    %572 = vmatprep.subr.bf16.mxu0 0
    %573 = vmatpush1.bf16.msra.mxu0 0
    %574 = vmatprep.subr.bf16.mxu0 0
    %575 = vmatpush1.bf16.msra.mxu0 0
    %576 = vmatprep.mubr.bf16.mxu0 0
    %577 = vmatmul.mubr.bf16.gmra.mrb[0].mxu0 %v542
    %v578 = vpop.f32.mrb[0].mxu0
    %v579 = vadd.f32 0.0, %v578
    %v580 = vpop.f32.mrb[0].mxu0
    %v581 = vadd.f32 0.0, %v580
    %v582 = vpop.f32.mrb[0].mxu0
    %v583 = vpop.f32.mrb[0].mxu0
    %584 = vdwg.mxu0
    %s585 = scalar_lea.vmem [#allocation2], 4
    %v586 = vld [vmem:[%s585] sm:$0xf]
    %v589 = vcombine.low %v408, %v410
    %v591 = vunpack.c.l.s4 1983009808
    %v592 = vunpack.c.0.s8 %v591
    %v593 = vlaneseq
    %v594 = vshrl.u32 %v593, 7
    %v595 = vsub.s32 %v592, %v594
    %v596 = vrot.slane %v589, %v595
    %v598 = vadd.f32 %v586, %v596
    %v599 = vxor.u32 %v598, 2147483648
    %v600 = vmul.f32 %v599, 1.442695
    %v601 = vpow.pop %v600
    %v602 = vadd.f32 %v601, 1.0
    %v603 = vrcp.pop %v602
    %v604 = vmul.f32 1.0, %v603
    %606 = vrot.lane.b32.xlu0 %v598, 64
    %v607 = vpop.permute.xlu0 %606
    %v608 = vrot.slane %v607, 2
    %v610 = vtanh.pop %v608
    %v611 = vmul.f32 %v604, %v278
    %v612 = vmul.f32 %v604, %v610
    %614 = vrot.lane.b32.xlu0 %v612, 64
    %v615 = vpop.permute.xlu0 %614
    %v617 = vadd.f32 %v611, %v615
    %v618 = vtanh.pop %v617
    %v620 = vrot.slane %v604, 2
    %623 = vrot.lane.b32.xlu0 %v618, 64
    %v624 = vpop.permute.xlu0 %623
    %v626 = vmul.f32 %v620, %v624
    %v627 = vpack.c.bf16 %v626, %v626
    %v629 = vsel %vm369, %v627, 0
    %631 = vmatprep.subr.bf16.mxu0 %v338
    %632 = vmatpush1.bf16.msra.mxu0 %v337
    %633 = vmatprep.subr.bf16.mxu0 %v342
    %634 = vmatpush1.bf16.msra.mxu0 %v341
    %635 = vmatprep.subr.bf16.mxu0 %v346
    %636 = vmatpush1.bf16.msra.mxu0 %v345
    %637 = vmatprep.subr.bf16.mxu0 %v350
    %638 = vmatpush1.bf16.msra.mxu0 %v349
    %639 = vmatprep.subr.bf16.mxu0 0
    %640 = vmatpush1.bf16.msra.mxu0 0
    %641 = vmatprep.subr.bf16.mxu0 0
    %642 = vmatpush1.bf16.msra.mxu0 0
    %643 = vmatprep.subr.bf16.mxu0 0
    %644 = vmatpush1.bf16.msra.mxu0 0
    %645 = vmatprep.subr.bf16.mxu0 0
    %646 = vmatpush1.bf16.msra.mxu0 0
    %647 = vmatprep.subr.bf16.mxu0 0
    %648 = vmatpush1.bf16.msra.mxu0 0
    %649 = vmatprep.subr.bf16.mxu0 0
    %650 = vmatpush1.bf16.msra.mxu0 0
    %651 = vmatprep.subr.bf16.mxu0 0
    %652 = vmatpush1.bf16.msra.mxu0 0
    %653 = vmatprep.subr.bf16.mxu0 0
    %654 = vmatpush1.bf16.msra.mxu0 0
    %655 = vmatprep.subr.bf16.mxu0 0
    %656 = vmatpush1.bf16.msra.mxu0 0
    %657 = vmatprep.subr.bf16.mxu0 0
    %658 = vmatpush1.bf16.msra.mxu0 0
    %659 = vmatprep.subr.bf16.mxu0 0
    %660 = vmatpush1.bf16.msra.mxu0 0
    %661 = vmatprep.subr.bf16.mxu0 0
    %662 = vmatpush1.bf16.msra.mxu0 0
    %663 = vmatprep.mubr.bf16.mxu0 0
    %664 = vmatmul.mubr.bf16.gmra.mrb[0].mxu0 %v629
    %v665 = vpop.f32.mrb[0].mxu0
    %v666 = vadd.f32 0.0, %v665
    %v667 = vpop.f32.mrb[0].mxu0
    %v668 = vadd.f32 0.0, %v667
    %v669 = vpop.f32.mrb[0].mxu0
    %v670 = vpop.f32.mrb[0].mxu0
    %671 = vdwg.mxu0
    %672 = vmatprep.subr.bf16.mxu0 %v340
    %673 = vmatpush1.bf16.msra.mxu0 %v339
    %674 = vmatprep.subr.bf16.mxu0 %v344
    %675 = vmatpush1.bf16.msra.mxu0 %v343
    %676 = vmatprep.subr.bf16.mxu0 %v348
    %677 = vmatpush1.bf16.msra.mxu0 %v347
    %678 = vmatprep.subr.bf16.mxu0 %v352
    %679 = vmatpush1.bf16.msra.mxu0 %v351
    %680 = vmatprep.subr.bf16.mxu0 0
    %681 = vmatpush1.bf16.msra.mxu0 0
    %682 = vmatprep.subr.bf16.mxu0 0
    %683 = vmatpush1.bf16.msra.mxu0 0
    %684 = vmatprep.subr.bf16.mxu0 0
    %685 = vmatpush1.bf16.msra.mxu0 0
    %686 = vmatprep.subr.bf16.mxu0 0
    %687 = vmatpush1.bf16.msra.mxu0 0
    %688 = vmatprep.subr.bf16.mxu0 0
    %689 = vmatpush1.bf16.msra.mxu0 0
    %690 = vmatprep.subr.bf16.mxu0 0
    %691 = vmatpush1.bf16.msra.mxu0 0
    %692 = vmatprep.subr.bf16.mxu0 0
    %693 = vmatpush1.bf16.msra.mxu0 0
    %694 = vmatprep.subr.bf16.mxu0 0
    %695 = vmatpush1.bf16.msra.mxu0 0
    %696 = vmatprep.subr.bf16.mxu0 0
    %697 = vmatpush1.bf16.msra.mxu0 0
    %698 = vmatprep.subr.bf16.mxu0 0
    %699 = vmatpush1.bf16.msra.mxu0 0
    %700 = vmatprep.subr.bf16.mxu0 0
    %701 = vmatpush1.bf16.msra.mxu0 0
    %702 = vmatprep.subr.bf16.mxu0 0
    %703 = vmatpush1.bf16.msra.mxu0 0
    %704 = vmatprep.mubr.bf16.mxu0 0
    %705 = vmatmul.mubr.bf16.gmra.mrb[0].mxu0 %v629
    %v706 = vpop.f32.mrb[0].mxu0
    %v707 = vadd.f32 0.0, %v706
    %v708 = vpop.f32.mrb[0].mxu0
    %v709 = vadd.f32 0.0, %v708
    %v710 = vpop.f32.mrb[0].mxu0
    %v711 = vpop.f32.mrb[0].mxu0
    %712 = vdwg.mxu0
    %v713 = vadd.f32 %v707, %v579
    %v714 = vadd.f32 %v709, %v581
    %v715 = vadd.f32 %v713, %v461
    %v716 = vadd.f32 %v714, %v465
    %v717 = vxor.u32 %v715, 2147483648
    %v718 = vxor.u32 %v716, 2147483648
    %v719 = vmul.f32 %v717, 1.442695
    %v720 = vpow.pop %v719
    %v721 = vmul.f32 %v718, 1.442695
    %v722 = vpow.pop %v721
    %v723 = vadd.f32 %v720, 1.0
    %v724 = vadd.f32 %v722, 1.0
    %v725 = vrcp.pop %v723
    %v726 = vmul.f32 1.0, %v725
    %v727 = vrcp.pop %v724
    %v728 = vmul.f32 1.0, %v727
    %v729 = vtanh.pop %v716
    %v730 = vmul.f32 %v726, %v493
    %732 = vrot.lane.b32.xlu0 %v729, 64
    %v733 = vpop.permute.xlu0 %732
    %v735 = vmul.f32 %v726, %v733
    %737 = vrot.lane.b32.xlu0 %v735, 64
    %v738 = vpop.permute.xlu0 %737
    %v740 = vadd.f32 %v730, %v738
    %v741 = vtanh.pop %v740
    %743 = vrot.lane.b32.xlu0 %v741, 64
    %v744 = vpop.permute.xlu0 %743
    %v746 = vmul.f32 %v728, %v744
    %v747 = vpack.c.bf16 %v746, %v746
    %v749 = vsel %vm369, %v747, 0
    %751 = vmatprep.subr.bf16.mxu0 %v526
    %752 = vmatpush1.bf16.msra.mxu0 %v525
    %753 = vmatprep.subr.bf16.mxu0 %v528
    %754 = vmatpush1.bf16.msra.mxu0 %v527
    %755 = vmatprep.subr.bf16.mxu0 %v530
    %756 = vmatpush1.bf16.msra.mxu0 %v529
    %757 = vmatprep.subr.bf16.mxu0 %v532
    %758 = vmatpush1.bf16.msra.mxu0 %v531
    %759 = vmatprep.subr.bf16.mxu0 0
    %760 = vmatpush1.bf16.msra.mxu0 0
    %761 = vmatprep.subr.bf16.mxu0 0
    %762 = vmatpush1.bf16.msra.mxu0 0
    %763 = vmatprep.subr.bf16.mxu0 0
    %764 = vmatpush1.bf16.msra.mxu0 0
    %765 = vmatprep.subr.bf16.mxu0 0
    %766 = vmatpush1.bf16.msra.mxu0 0
    %767 = vmatprep.subr.bf16.mxu0 0
    %768 = vmatpush1.bf16.msra.mxu0 0
    %769 = vmatprep.subr.bf16.mxu0 0
    %770 = vmatpush1.bf16.msra.mxu0 0
    %771 = vmatprep.subr.bf16.mxu0 0
    %772 = vmatpush1.bf16.msra.mxu0 0
    %773 = vmatprep.subr.bf16.mxu0 0
    %774 = vmatpush1.bf16.msra.mxu0 0
    %775 = vmatprep.subr.bf16.mxu0 0
    %776 = vmatpush1.bf16.msra.mxu0 0
    %777 = vmatprep.subr.bf16.mxu0 0
    %778 = vmatpush1.bf16.msra.mxu0 0
    %779 = vmatprep.subr.bf16.mxu0 0
    %780 = vmatpush1.bf16.msra.mxu0 0
    %781 = vmatprep.subr.bf16.mxu0 0
    %782 = vmatpush1.bf16.msra.mxu0 0
    %783 = vmatprep.mubr.bf16.mxu0 0
    %784 = vmatmul.mubr.bf16.gmra.mrb[0].mxu0 %v749
    %v785 = vpop.f32.mrb[0].mxu0
    %v786 = vadd.f32 0.0, %v785
    %v787 = vpop.f32.mrb[0].mxu0
    %v788 = vadd.f32 0.0, %v787
    %v789 = vpop.f32.mrb[0].mxu0
    %v790 = vpop.f32.mrb[0].mxu0
    %791 = vdwg.mxu0
    %s792 = scalar_lea.vmem [#allocation2], 8
    %v793 = vld [vmem:[%s792] sm:$0xf]
    %v796 = vcombine.low %v666, %v668
    %v798 = vunpack.c.l.s4 1983009808
    %v799 = vunpack.c.0.s8 %v798
    %v800 = vlaneseq
    %v801 = vshrl.u32 %v800, 7
    %v802 = vsub.s32 %v799, %v801
    %v803 = vrot.slane %v796, %v802
    %v805 = vadd.f32 %v793, %v803
    %v806 = vxor.u32 %v805, 2147483648
    %v807 = vmul.f32 %v806, 1.442695
    %v808 = vpow.pop %v807
    %v809 = vadd.f32 %v808, 1.0
    %v810 = vrcp.pop %v809
    %v811 = vmul.f32 1.0, %v810
    %813 = vrot.lane.b32.xlu0 %v805, 64
    %v814 = vpop.permute.xlu0 %813
    %v815 = vrot.slane %v814, 2
    %v817 = vtanh.pop %v815
    %v818 = vmul.f32 %v811, %v617
    %v819 = vmul.f32 %v811, %v817
    %821 = vrot.lane.b32.xlu0 %v819, 64
    %v822 = vpop.permute.xlu0 %821
    %v824 = vadd.f32 %v818, %v822
    %v825 = vtanh.pop %v824
    %v827 = vrot.slane %v811, 2
    %830 = vrot.lane.b32.xlu0 %v825, 64
    %v831 = vpop.permute.xlu0 %830
    %v833 = vmul.f32 %v827, %v831
    %v834 = vpack.c.bf16 %v833, %v833
    %v836 = vsel %vm369, %v834, 0
    %838 = vmatprep.subr.bf16.mxu0 %v338
    %839 = vmatpush1.bf16.msra.mxu0 %v337
    %840 = vmatprep.subr.bf16.mxu0 %v342
    %841 = vmatpush1.bf16.msra.mxu0 %v341
    %842 = vmatprep.subr.bf16.mxu0 %v346
    %843 = vmatpush1.bf16.msra.mxu0 %v345
    %844 = vmatprep.subr.bf16.mxu0 %v350
    %845 = vmatpush1.bf16.msra.mxu0 %v349
    %846 = vmatprep.subr.bf16.mxu0 0
    %847 = vmatpush1.bf16.msra.mxu0 0
    %848 = vmatprep.subr.bf16.mxu0 0
    %849 = vmatpush1.bf16.msra.mxu0 0
    %850 = vmatprep.subr.bf16.mxu0 0
    %851 = vmatpush1.bf16.msra.mxu0 0
    %852 = vmatprep.subr.bf16.mxu0 0
    %853 = vmatpush1.bf16.msra.mxu0 0
    %854 = vmatprep.subr.bf16.mxu0 0
    %855 = vmatpush1.bf16.msra.mxu0 0
    %856 = vmatprep.subr.bf16.mxu0 0
    %857 = vmatpush1.bf16.msra.mxu0 0
    %858 = vmatprep.subr.bf16.mxu0 0
    %859 = vmatpush1.bf16.msra.mxu0 0
    %860 = vmatprep.subr.bf16.mxu0 0
    %861 = vmatpush1.bf16.msra.mxu0 0
    %862 = vmatprep.subr.bf16.mxu0 0
    %863 = vmatpush1.bf16.msra.mxu0 0
    %864 = vmatprep.subr.bf16.mxu0 0
    %865 = vmatpush1.bf16.msra.mxu0 0
    %866 = vmatprep.subr.bf16.mxu0 0
    %867 = vmatpush1.bf16.msra.mxu0 0
    %868 = vmatprep.subr.bf16.mxu0 0
    %869 = vmatpush1.bf16.msra.mxu0 0
    %870 = vmatprep.mubr.bf16.mxu0 0
    %871 = vmatmul.mubr.bf16.gmra.mrb[0].mxu0 %v836
    %v872 = vpop.f32.mrb[0].mxu0
    %v873 = vadd.f32 0.0, %v872
    %v874 = vpop.f32.mrb[0].mxu0
    %v875 = vadd.f32 0.0, %v874
    %v876 = vpop.f32.mrb[0].mxu0
    %v877 = vpop.f32.mrb[0].mxu0
    %878 = vdwg.mxu0
    %879 = vmatprep.subr.bf16.mxu0 %v340
    %880 = vmatpush1.bf16.msra.mxu0 %v339
    %881 = vmatprep.subr.bf16.mxu0 %v344
    %882 = vmatpush1.bf16.msra.mxu0 %v343
    %883 = vmatprep.subr.bf16.mxu0 %v348
    %884 = vmatpush1.bf16.msra.mxu0 %v347
    %885 = vmatprep.subr.bf16.mxu0 %v352
    %886 = vmatpush1.bf16.msra.mxu0 %v351
    %887 = vmatprep.subr.bf16.mxu0 0
    %888 = vmatpush1.bf16.msra.mxu0 0
    %889 = vmatprep.subr.bf16.mxu0 0
    %890 = vmatpush1.bf16.msra.mxu0 0
    %891 = vmatprep.subr.bf16.mxu0 0
    %892 = vmatpush1.bf16.msra.mxu0 0
    %893 = vmatprep.subr.bf16.mxu0 0
    %894 = vmatpush1.bf16.msra.mxu0 0
    %895 = vmatprep.subr.bf16.mxu0 0
    %896 = vmatpush1.bf16.msra.mxu0 0
    %897 = vmatprep.subr.bf16.mxu0 0
    %898 = vmatpush1.bf16.msra.mxu0 0
    %899 = vmatprep.subr.bf16.mxu0 0
    %900 = vmatpush1.bf16.msra.mxu0 0
    %901 = vmatprep.subr.bf16.mxu0 0
    %902 = vmatpush1.bf16.msra.mxu0 0
    %903 = vmatprep.subr.bf16.mxu0 0
    %904 = vmatpush1.bf16.msra.mxu0 0
    %905 = vmatprep.subr.bf16.mxu0 0
    %906 = vmatpush1.bf16.msra.mxu0 0
    %907 = vmatprep.subr.bf16.mxu0 0
    %908 = vmatpush1.bf16.msra.mxu0 0
    %909 = vmatprep.subr.bf16.mxu0 0
    %910 = vmatpush1.bf16.msra.mxu0 0
    %911 = vmatprep.mubr.bf16.mxu0 0
    %912 = vmatmul.mubr.bf16.gmra.mrb[0].mxu0 %v836
    %v913 = vpop.f32.mrb[0].mxu0
    %v914 = vadd.f32 0.0, %v913
    %v915 = vpop.f32.mrb[0].mxu0
    %v916 = vadd.f32 0.0, %v915
    %v917 = vpop.f32.mrb[0].mxu0
    %v918 = vpop.f32.mrb[0].mxu0
    %919 = vdwg.mxu0
    %v920 = vadd.f32 %v914, %v786
    %v921 = vadd.f32 %v916, %v788
    %v922 = vadd.f32 %v920, %v461
    %v923 = vadd.f32 %v921, %v465
    %v924 = vxor.u32 %v922, 2147483648
    %v925 = vxor.u32 %v923, 2147483648
    %v926 = vmul.f32 %v924, 1.442695
    %v927 = vpow.pop %v926
    %v928 = vmul.f32 %v925, 1.442695
    %v929 = vpow.pop %v928
    %v930 = vadd.f32 %v927, 1.0
    %v931 = vadd.f32 %v929, 1.0
    %v932 = vrcp.pop %v930
    %v933 = vmul.f32 1.0, %v932
    %v934 = vrcp.pop %v931
    %v935 = vmul.f32 1.0, %v934
    %v936 = vtanh.pop %v923
    %v937 = vmul.f32 %v933, %v740
    %939 = vrot.lane.b32.xlu0 %v936, 64
    %v940 = vpop.permute.xlu0 %939
    %v942 = vmul.f32 %v933, %v940
    %944 = vrot.lane.b32.xlu0 %v942, 64
    %v945 = vpop.permute.xlu0 %944
    %v947 = vadd.f32 %v937, %v945
    %v948 = vtanh.pop %v947
    %950 = vrot.lane.b32.xlu0 %v948, 64
    %v951 = vpop.permute.xlu0 %950
    %v953 = vmul.f32 %v935, %v951
    %v954 = vpack.c.bf16 %v953, %v953
    %v956 = vsel %vm369, %v954, 0
    %958 = vmatprep.subr.bf16.mxu0 %v526
    %959 = vmatpush1.bf16.msra.mxu0 %v525
    %960 = vmatprep.subr.bf16.mxu0 %v528
    %961 = vmatpush1.bf16.msra.mxu0 %v527
    %962 = vmatprep.subr.bf16.mxu0 %v530
    %963 = vmatpush1.bf16.msra.mxu0 %v529
    %964 = vmatprep.subr.bf16.mxu0 %v532
    %965 = vmatpush1.bf16.msra.mxu0 %v531
    %966 = vmatprep.subr.bf16.mxu0 0
    %967 = vmatpush1.bf16.msra.mxu0 0
    %968 = vmatprep.subr.bf16.mxu0 0
    %969 = vmatpush1.bf16.msra.mxu0 0
    %970 = vmatprep.subr.bf16.mxu0 0
    %971 = vmatpush1.bf16.msra.mxu0 0
    %972 = vmatprep.subr.bf16.mxu0 0
    %973 = vmatpush1.bf16.msra.mxu0 0
    %974 = vmatprep.subr.bf16.mxu0 0
    %975 = vmatpush1.bf16.msra.mxu0 0
    %976 = vmatprep.subr.bf16.mxu0 0
    %977 = vmatpush1.bf16.msra.mxu0 0
    %978 = vmatprep.subr.bf16.mxu0 0
    %979 = vmatpush1.bf16.msra.mxu0 0
    %980 = vmatprep.subr.bf16.mxu0 0
    %981 = vmatpush1.bf16.msra.mxu0 0
    %982 = vmatprep.subr.bf16.mxu0 0
    %983 = vmatpush1.bf16.msra.mxu0 0
    %984 = vmatprep.subr.bf16.mxu0 0
    %985 = vmatpush1.bf16.msra.mxu0 0
    %986 = vmatprep.subr.bf16.mxu0 0
    %987 = vmatpush1.bf16.msra.mxu0 0
    %988 = vmatprep.subr.bf16.mxu0 0
    %989 = vmatpush1.bf16.msra.mxu0 0
    %990 = vmatprep.mubr.bf16.mxu0 0
    %991 = vmatmul.mubr.bf16.gmra.mrb[0].mxu0 %v956
    %v992 = vpop.f32.mrb[0].mxu0
    %v993 = vadd.f32 0.0, %v992
    %v994 = vpop.f32.mrb[0].mxu0
    %v995 = vadd.f32 0.0, %v994
    %v996 = vpop.f32.mrb[0].mxu0
    %v997 = vpop.f32.mrb[0].mxu0
    %998 = vdwg.mxu0
    %s999 = scalar_lea.vmem [#allocation2], 12
    %v1000 = vld [vmem:[%s999] sm:$0xf]
    %v1003 = vcombine.low %v873, %v875
    %v1005 = vunpack.c.l.s4 1983009808
    %v1006 = vunpack.c.0.s8 %v1005
    %v1007 = vlaneseq
    %v1008 = vshrl.u32 %v1007, 7
    %v1009 = vsub.s32 %v1006, %v1008
    %v1010 = vrot.slane %v1003, %v1009
    %v1012 = vadd.f32 %v1000, %v1010
    %v1013 = vxor.u32 %v1012, 2147483648
    %v1014 = vmul.f32 %v1013, 1.442695
    %v1015 = vpow.pop %v1014
    %v1016 = vadd.f32 %v1015, 1.0
    %v1017 = vrcp.pop %v1016
    %v1018 = vmul.f32 1.0, %v1017
    %1020 = vrot.lane.b32.xlu0 %v1012, 64
    %v1021 = vpop.permute.xlu0 %1020
    %v1022 = vrot.slane %v1021, 2
    %v1024 = vtanh.pop %v1022
    %v1025 = vmul.f32 %v1018, %v824
    %v1026 = vmul.f32 %v1018, %v1024
    %1028 = vrot.lane.b32.xlu0 %v1026, 64
    %v1029 = vpop.permute.xlu0 %1028
    %v1031 = vadd.f32 %v1025, %v1029
    %v1032 = vtanh.pop %v1031
    %v1034 = vrot.slane %v1018, 2
    %1037 = vrot.lane.b32.xlu0 %v1032, 64
    %v1038 = vpop.permute.xlu0 %1037
    %v1040 = vmul.f32 %v1034, %v1038
    %v1041 = vpack.c.bf16 %v1040, %v1040
    %v1043 = vsel %vm369, %v1041, 0
    %1045 = vmatprep.subr.bf16.mxu0 %v338
    %1046 = vmatpush1.bf16.msra.mxu0 %v337
    %1047 = vmatprep.subr.bf16.mxu0 %v342
    %1048 = vmatpush1.bf16.msra.mxu0 %v341
    %1049 = vmatprep.subr.bf16.mxu0 %v346
    %1050 = vmatpush1.bf16.msra.mxu0 %v345
    %1051 = vmatprep.subr.bf16.mxu0 %v350
    %1052 = vmatpush1.bf16.msra.mxu0 %v349
    %1053 = vmatprep.subr.bf16.mxu0 0
    %1054 = vmatpush1.bf16.msra.mxu0 0
    %1055 = vmatprep.subr.bf16.mxu0 0
    %1056 = vmatpush1.bf16.msra.mxu0 0
    %1057 = vmatprep.subr.bf16.mxu0 0
    %1058 = vmatpush1.bf16.msra.mxu0 0
    %1059 = vmatprep.subr.bf16.mxu0 0
    %1060 = vmatpush1.bf16.msra.mxu0 0
    %1061 = vmatprep.subr.bf16.mxu0 0
    %1062 = vmatpush1.bf16.msra.mxu0 0
    %1063 = vmatprep.subr.bf16.mxu0 0
    %1064 = vmatpush1.bf16.msra.mxu0 0
    %1065 = vmatprep.subr.bf16.mxu0 0
    %1066 = vmatpush1.bf16.msra.mxu0 0
    %1067 = vmatprep.subr.bf16.mxu0 0
    %1068 = vmatpush1.bf16.msra.mxu0 0
    %1069 = vmatprep.subr.bf16.mxu0 0
    %1070 = vmatpush1.bf16.msra.mxu0 0
    %1071 = vmatprep.subr.bf16.mxu0 0
    %1072 = vmatpush1.bf16.msra.mxu0 0
    %1073 = vmatprep.subr.bf16.mxu0 0
    %1074 = vmatpush1.bf16.msra.mxu0 0
    %1075 = vmatprep.subr.bf16.mxu0 0
    %1076 = vmatpush1.bf16.msra.mxu0 0
    %1077 = vmatprep.mubr.bf16.mxu0 0
    %1078 = vmatmul.mubr.bf16.gmra.mrb[0].mxu0 %v1043
    %v1079 = vpop.f32.mrb[0].mxu0
    %v1080 = vadd.f32 0.0, %v1079
    %v1081 = vpop.f32.mrb[0].mxu0
    %v1082 = vadd.f32 0.0, %v1081
    %v1083 = vpop.f32.mrb[0].mxu0
    %v1084 = vpop.f32.mrb[0].mxu0
    %1085 = vdwg.mxu0
    %1086 = vmatprep.subr.bf16.mxu0 %v340
    %1087 = vmatpush1.bf16.msra.mxu0 %v339
    %1088 = vmatprep.subr.bf16.mxu0 %v344
    %1089 = vmatpush1.bf16.msra.mxu0 %v343
    %1090 = vmatprep.subr.bf16.mxu0 %v348
    %1091 = vmatpush1.bf16.msra.mxu0 %v347
    %1092 = vmatprep.subr.bf16.mxu0 %v352
    %1093 = vmatpush1.bf16.msra.mxu0 %v351
    %1094 = vmatprep.subr.bf16.mxu0 0
    %1095 = vmatpush1.bf16.msra.mxu0 0
    %1096 = vmatprep.subr.bf16.mxu0 0
    %1097 = vmatpush1.bf16.msra.mxu0 0
    %1098 = vmatprep.subr.bf16.mxu0 0
    %1099 = vmatpush1.bf16.msra.mxu0 0
    %1100 = vmatprep.subr.bf16.mxu0 0
    %1101 = vmatpush1.bf16.msra.mxu0 0
    %1102 = vmatprep.subr.bf16.mxu0 0
    %1103 = vmatpush1.bf16.msra.mxu0 0
    %1104 = vmatprep.subr.bf16.mxu0 0
    %1105 = vmatpush1.bf16.msra.mxu0 0
    %1106 = vmatprep.subr.bf16.mxu0 0
    %1107 = vmatpush1.bf16.msra.mxu0 0
    %1108 = vmatprep.subr.bf16.mxu0 0
    %1109 = vmatpush1.bf16.msra.mxu0 0
    %1110 = vmatprep.subr.bf16.mxu0 0
    %1111 = vmatpush1.bf16.msra.mxu0 0
    %1112 = vmatprep.subr.bf16.mxu0 0
    %1113 = vmatpush1.bf16.msra.mxu0 0
    %1114 = vmatprep.subr.bf16.mxu0 0
    %1115 = vmatpush1.bf16.msra.mxu0 0
    %1116 = vmatprep.subr.bf16.mxu0 0
    %1117 = vmatpush1.bf16.msra.mxu0 0
    %1118 = vmatprep.mubr.bf16.mxu0 0
    %1119 = vmatmul.mubr.bf16.gmra.mrb[0].mxu0 %v1043
    %v1120 = vpop.f32.mrb[0].mxu0
    %v1121 = vadd.f32 0.0, %v1120
    %v1122 = vpop.f32.mrb[0].mxu0
    %v1123 = vadd.f32 0.0, %v1122
    %v1124 = vpop.f32.mrb[0].mxu0
    %v1125 = vpop.f32.mrb[0].mxu0
    %1126 = vdwg.mxu0
    %v1127 = vadd.f32 %v1121, %v993
    %v1128 = vadd.f32 %v1123, %v995
    %v1129 = vadd.f32 %v1127, %v461
    %v1130 = vadd.f32 %v1128, %v465
    %v1131 = vxor.u32 %v1129, 2147483648
    %v1132 = vxor.u32 %v1130, 2147483648
    %v1133 = vmul.f32 %v1131, 1.442695
    %v1134 = vpow.pop %v1133
    %v1135 = vmul.f32 %v1132, 1.442695
    %v1136 = vpow.pop %v1135
    %v1137 = vadd.f32 %v1134, 1.0
    %v1138 = vadd.f32 %v1136, 1.0
    %v1139 = vrcp.pop %v1137
    %v1140 = vmul.f32 1.0, %v1139
    %v1141 = vrcp.pop %v1138
    %v1142 = vmul.f32 1.0, %v1141
    %v1143 = vtanh.pop %v1130
    %v1144 = vmul.f32 %v1140, %v947
    %1146 = vrot.lane.b32.xlu0 %v1143, 64
    %v1147 = vpop.permute.xlu0 %1146
    %v1149 = vmul.f32 %v1140, %v1147
    %1151 = vrot.lane.b32.xlu0 %v1149, 64
    %v1152 = vpop.permute.xlu0 %1151
    %v1154 = vadd.f32 %v1144, %v1152
    %v1155 = vtanh.pop %v1154
    %1157 = vrot.lane.b32.xlu0 %v1155, 64
    %v1158 = vpop.permute.xlu0 %1157
    %v1160 = vmul.f32 %v1142, %v1158
    %v1161 = vpack.c.bf16 %v1160, %v1160
    %v1163 = vsel %vm369, %v1161, 0
    %1165 = vmatprep.subr.bf16.mxu0 %v526
    %1166 = vmatpush1.bf16.msra.mxu0 %v525
    %1167 = vmatprep.subr.bf16.mxu0 %v528
    %1168 = vmatpush1.bf16.msra.mxu0 %v527
    %1169 = vmatprep.subr.bf16.mxu0 %v530
    %1170 = vmatpush1.bf16.msra.mxu0 %v529
    %1171 = vmatprep.subr.bf16.mxu0 %v532
    %1172 = vmatpush1.bf16.msra.mxu0 %v531
    %1173 = vmatprep.subr.bf16.mxu0 0
    %1174 = vmatpush1.bf16.msra.mxu0 0
    %1175 = vmatprep.subr.bf16.mxu0 0
    %1176 = vmatpush1.bf16.msra.mxu0 0
    %1177 = vmatprep.subr.bf16.mxu0 0
    %1178 = vmatpush1.bf16.msra.mxu0 0
    %1179 = vmatprep.subr.bf16.mxu0 0
    %1180 = vmatpush1.bf16.msra.mxu0 0
    %1181 = vmatprep.subr.bf16.mxu0 0
    %1182 = vmatpush1.bf16.msra.mxu0 0
    %1183 = vmatprep.subr.bf16.mxu0 0
    %1184 = vmatpush1.bf16.msra.mxu0 0
    %1185 = vmatprep.subr.bf16.mxu0 0
    %1186 = vmatpush1.bf16.msra.mxu0 0
    %1187 = vmatprep.subr.bf16.mxu0 0
    %1188 = vmatpush1.bf16.msra.mxu0 0
    %1189 = vmatprep.subr.bf16.mxu0 0
    %1190 = vmatpush1.bf16.msra.mxu0 0
    %1191 = vmatprep.subr.bf16.mxu0 0
    %1192 = vmatpush1.bf16.msra.mxu0 0
    %1193 = vmatprep.subr.bf16.mxu0 0
    %1194 = vmatpush1.bf16.msra.mxu0 0
    %1195 = vmatprep.subr.bf16.mxu0 0
    %1196 = vmatpush1.bf16.msra.mxu0 0
    %1197 = vmatprep.mubr.bf16.mxu0 0
    %1198 = vmatmul.mubr.bf16.gmra.mrb[0].mxu0 %v1163
    %v1199 = vpop.f32.mrb[0].mxu0
    %v1200 = vadd.f32 0.0, %v1199
    %v1201 = vpop.f32.mrb[0].mxu0
    %v1202 = vadd.f32 0.0, %v1201
    %v1203 = vpop.f32.mrb[0].mxu0
    %v1204 = vpop.f32.mrb[0].mxu0
    %1205 = vdwg.mxu0
    %s1206 = scalar_lea.vmem [#allocation2], 16
    %v1207 = vld [vmem:[%s1206] sm:$0xf]
    %v1210 = vcombine.low %v1080, %v1082
    %v1212 = vunpack.c.l.s4 1983009808
    %v1213 = vunpack.c.0.s8 %v1212
    %v1214 = vlaneseq
    %v1215 = vshrl.u32 %v1214, 7
    %v1216 = vsub.s32 %v1213, %v1215
    %v1217 = vrot.slane %v1210, %v1216
    %v1219 = vadd.f32 %v1207, %v1217
    %v1220 = vxor.u32 %v1219, 2147483648
    %v1221 = vmul.f32 %v1220, 1.442695
    %v1222 = vpow.pop %v1221
    %v1223 = vadd.f32 %v1222, 1.0
    %v1224 = vrcp.pop %v1223
    %v1225 = vmul.f32 1.0, %v1224
    %1227 = vrot.lane.b32.xlu0 %v1219, 64
    %v1228 = vpop.permute.xlu0 %1227
    %v1229 = vrot.slane %v1228, 2
    %v1231 = vtanh.pop %v1229
    %v1232 = vmul.f32 %v1225, %v1031
    %v1233 = vmul.f32 %v1225, %v1231
    %1235 = vrot.lane.b32.xlu0 %v1233, 64
    %v1236 = vpop.permute.xlu0 %1235
    %v1238 = vadd.f32 %v1232, %v1236
    %v1239 = vtanh.pop %v1238
    %v1241 = vrot.slane %v1225, 2
    %1244 = vrot.lane.b32.xlu0 %v1239, 64
    %v1245 = vpop.permute.xlu0 %1244
    %v1247 = vmul.f32 %v1241, %v1245
    %v1248 = vpack.c.bf16 %v1247, %v1247
    %v1250 = vsel %vm369, %v1248, 0
    %1252 = vmatprep.subr.bf16.mxu0 %v338
    %1253 = vmatpush1.bf16.msra.mxu0 %v337
    %1254 = vmatprep.subr.bf16.mxu0 %v342
    %1255 = vmatpush1.bf16.msra.mxu0 %v341
    %1256 = vmatprep.subr.bf16.mxu0 %v346
    %1257 = vmatpush1.bf16.msra.mxu0 %v345
    %1258 = vmatprep.subr.bf16.mxu0 %v350
    %1259 = vmatpush1.bf16.msra.mxu0 %v349
    %1260 = vmatprep.subr.bf16.mxu0 0
    %1261 = vmatpush1.bf16.msra.mxu0 0
    %1262 = vmatprep.subr.bf16.mxu0 0
    %1263 = vmatpush1.bf16.msra.mxu0 0
    %1264 = vmatprep.subr.bf16.mxu0 0
    %1265 = vmatpush1.bf16.msra.mxu0 0
    %1266 = vmatprep.subr.bf16.mxu0 0
    %1267 = vmatpush1.bf16.msra.mxu0 0
    %1268 = vmatprep.subr.bf16.mxu0 0
    %1269 = vmatpush1.bf16.msra.mxu0 0
    %1270 = vmatprep.subr.bf16.mxu0 0
    %1271 = vmatpush1.bf16.msra.mxu0 0
    %1272 = vmatprep.subr.bf16.mxu0 0
    %1273 = vmatpush1.bf16.msra.mxu0 0
    %1274 = vmatprep.subr.bf16.mxu0 0
    %1275 = vmatpush1.bf16.msra.mxu0 0
    %1276 = vmatprep.subr.bf16.mxu0 0
    %1277 = vmatpush1.bf16.msra.mxu0 0
    %1278 = vmatprep.subr.bf16.mxu0 0
    %1279 = vmatpush1.bf16.msra.mxu0 0
    %1280 = vmatprep.subr.bf16.mxu0 0
    %1281 = vmatpush1.bf16.msra.mxu0 0
    %1282 = vmatprep.subr.bf16.mxu0 0
    %1283 = vmatpush1.bf16.msra.mxu0 0
    %1284 = vmatprep.mubr.bf16.mxu0 0
    %1285 = vmatmul.mubr.bf16.gmra.mrb[0].mxu0 %v1250
    %v1286 = vpop.f32.mrb[0].mxu0
    %v1287 = vadd.f32 0.0, %v1286
    %v1288 = vpop.f32.mrb[0].mxu0
    %v1289 = vadd.f32 0.0, %v1288
    %v1290 = vpop.f32.mrb[0].mxu0
    %v1291 = vpop.f32.mrb[0].mxu0
    %1292 = vdwg.mxu0
    %1293 = vmatprep.subr.bf16.mxu0 %v340
    %1294 = vmatpush1.bf16.msra.mxu0 %v339
    %1295 = vmatprep.subr.bf16.mxu0 %v344
    %1296 = vmatpush1.bf16.msra.mxu0 %v343
    %1297 = vmatprep.subr.bf16.mxu0 %v348
    %1298 = vmatpush1.bf16.msra.mxu0 %v347
    %1299 = vmatprep.subr.bf16.mxu0 %v352
    %1300 = vmatpush1.bf16.msra.mxu0 %v351
    %1301 = vmatprep.subr.bf16.mxu0 0
    %1302 = vmatpush1.bf16.msra.mxu0 0
    %1303 = vmatprep.subr.bf16.mxu0 0
    %1304 = vmatpush1.bf16.msra.mxu0 0
    %1305 = vmatprep.subr.bf16.mxu0 0
    %1306 = vmatpush1.bf16.msra.mxu0 0
    %1307 = vmatprep.subr.bf16.mxu0 0
    %1308 = vmatpush1.bf16.msra.mxu0 0
    %1309 = vmatprep.subr.bf16.mxu0 0
    %1310 = vmatpush1.bf16.msra.mxu0 0
    %1311 = vmatprep.subr.bf16.mxu0 0
    %1312 = vmatpush1.bf16.msra.mxu0 0
    %1313 = vmatprep.subr.bf16.mxu0 0
    %1314 = vmatpush1.bf16.msra.mxu0 0
    %1315 = vmatprep.subr.bf16.mxu0 0
    %1316 = vmatpush1.bf16.msra.mxu0 0
    %1317 = vmatprep.subr.bf16.mxu0 0
    %1318 = vmatpush1.bf16.msra.mxu0 0
    %1319 = vmatprep.subr.bf16.mxu0 0
    %1320 = vmatpush1.bf16.msra.mxu0 0
    %1321 = vmatprep.subr.bf16.mxu0 0
    %1322 = vmatpush1.bf16.msra.mxu0 0
    %1323 = vmatprep.subr.bf16.mxu0 0
    %1324 = vmatpush1.bf16.msra.mxu0 0
    %1325 = vmatprep.mubr.bf16.mxu0 0
    %1326 = vmatmul.mubr.bf16.gmra.mrb[0].mxu0 %v1250
    %v1327 = vpop.f32.mrb[0].mxu0
    %v1328 = vadd.f32 0.0, %v1327
    %v1329 = vpop.f32.mrb[0].mxu0
    %v1330 = vadd.f32 0.0, %v1329
    %v1331 = vpop.f32.mrb[0].mxu0
    %v1332 = vpop.f32.mrb[0].mxu0
    %1333 = vdwg.mxu0
    %v1334 = vadd.f32 %v1328, %v1200
    %v1335 = vadd.f32 %v1330, %v1202
    %v1336 = vadd.f32 %v1334, %v461
    %v1337 = vadd.f32 %v1335, %v465
    %v1338 = vxor.u32 %v1336, 2147483648
    %v1339 = vxor.u32 %v1337, 2147483648
    %v1340 = vmul.f32 %v1338, 1.442695
    %v1341 = vpow.pop %v1340
    %v1342 = vmul.f32 %v1339, 1.442695
    %v1343 = vpow.pop %v1342
    %v1344 = vadd.f32 %v1341, 1.0
    %v1345 = vadd.f32 %v1343, 1.0
    %v1346 = vrcp.pop %v1344
    %v1347 = vmul.f32 1.0, %v1346
    %v1348 = vrcp.pop %v1345
    %v1349 = vmul.f32 1.0, %v1348
    %v1350 = vtanh.pop %v1337
    %v1351 = vmul.f32 %v1347, %v1154
    %1353 = vrot.lane.b32.xlu0 %v1350, 64
    %v1354 = vpop.permute.xlu0 %1353
    %v1356 = vmul.f32 %v1347, %v1354
    %1358 = vrot.lane.b32.xlu0 %v1356, 64
    %v1359 = vpop.permute.xlu0 %1358
    %v1361 = vadd.f32 %v1351, %v1359
    %v1362 = vtanh.pop %v1361
    %1364 = vrot.lane.b32.xlu0 %v1362, 64
    %v1365 = vpop.permute.xlu0 %1364
    %v1367 = vmul.f32 %v1349, %v1365
    %v1368 = vpack.c.bf16 %v1367, %v1367
    %v1370 = vsel %vm369, %v1368, 0
    %1372 = vmatprep.subr.bf16.mxu0 %v526
    %1373 = vmatpush1.bf16.msra.mxu0 %v525
    %1374 = vmatprep.subr.bf16.mxu0 %v528
    %1375 = vmatpush1.bf16.msra.mxu0 %v527
    %1376 = vmatprep.subr.bf16.mxu0 %v530
    %1377 = vmatpush1.bf16.msra.mxu0 %v529
    %1378 = vmatprep.subr.bf16.mxu0 %v532
    %1379 = vmatpush1.bf16.msra.mxu0 %v531
    %1380 = vmatprep.subr.bf16.mxu0 0
    %1381 = vmatpush1.bf16.msra.mxu0 0
    %1382 = vmatprep.subr.bf16.mxu0 0
    %1383 = vmatpush1.bf16.msra.mxu0 0
    %1384 = vmatprep.subr.bf16.mxu0 0
    %1385 = vmatpush1.bf16.msra.mxu0 0
    %1386 = vmatprep.subr.bf16.mxu0 0
    %1387 = vmatpush1.bf16.msra.mxu0 0
    %1388 = vmatprep.subr.bf16.mxu0 0
    %1389 = vmatpush1.bf16.msra.mxu0 0
    %1390 = vmatprep.subr.bf16.mxu0 0
    %1391 = vmatpush1.bf16.msra.mxu0 0
    %1392 = vmatprep.subr.bf16.mxu0 0
    %1393 = vmatpush1.bf16.msra.mxu0 0
    %1394 = vmatprep.subr.bf16.mxu0 0
    %1395 = vmatpush1.bf16.msra.mxu0 0
    %1396 = vmatprep.subr.bf16.mxu0 0
    %1397 = vmatpush1.bf16.msra.mxu0 0
    %1398 = vmatprep.subr.bf16.mxu0 0
    %1399 = vmatpush1.bf16.msra.mxu0 0
    %1400 = vmatprep.subr.bf16.mxu0 0
    %1401 = vmatpush1.bf16.msra.mxu0 0
    %1402 = vmatprep.subr.bf16.mxu0 0
    %1403 = vmatpush1.bf16.msra.mxu0 0
    %1404 = vmatprep.mubr.bf16.mxu0 0
    %1405 = vmatmul.mubr.bf16.gmra.mrb[0].mxu0 %v1370
    %v1406 = vpop.f32.mrb[0].mxu0
    %v1407 = vadd.f32 0.0, %v1406
    %v1408 = vpop.f32.mrb[0].mxu0
    %v1409 = vadd.f32 0.0, %v1408
    %v1410 = vpop.f32.mrb[0].mxu0
    %v1411 = vpop.f32.mrb[0].mxu0
    %1412 = vdwg.mxu0
    %s1413 = scalar_lea.vmem [#allocation2], 20
    %v1414 = vld [vmem:[%s1413] sm:$0xf]
    %v1417 = vcombine.low %v1287, %v1289
    %v1419 = vunpack.c.l.s4 1983009808
    %v1420 = vunpack.c.0.s8 %v1419
    %v1421 = vlaneseq
    %v1422 = vshrl.u32 %v1421, 7
    %v1423 = vsub.s32 %v1420, %v1422
    %v1424 = vrot.slane %v1417, %v1423
    %v1426 = vadd.f32 %v1414, %v1424
    %v1427 = vxor.u32 %v1426, 2147483648
    %v1428 = vmul.f32 %v1427, 1.442695
    %v1429 = vpow.pop %v1428
    %v1430 = vadd.f32 %v1429, 1.0
    %v1431 = vrcp.pop %v1430
    %v1432 = vmul.f32 1.0, %v1431
    %1434 = vrot.lane.b32.xlu0 %v1426, 64
    %v1435 = vpop.permute.xlu0 %1434
    %v1436 = vrot.slane %v1435, 2
    %v1438 = vtanh.pop %v1436
    %v1439 = vmul.f32 %v1432, %v1238
    %v1440 = vmul.f32 %v1432, %v1438
    %1442 = vrot.lane.b32.xlu0 %v1440, 64
    %v1443 = vpop.permute.xlu0 %1442
    %v1445 = vadd.f32 %v1439, %v1443
    %v1446 = vtanh.pop %v1445
    %v1448 = vrot.slane %v1432, 2
    %1451 = vrot.lane.b32.xlu0 %v1446, 64
    %v1452 = vpop.permute.xlu0 %1451
    %v1454 = vmul.f32 %v1448, %v1452
    %v1455 = vpack.c.bf16 %v1454, %v1454
    %v1457 = vsel %vm369, %v1455, 0
    %1459 = vmatprep.subr.bf16.mxu0 %v338
    %1460 = vmatpush1.bf16.msra.mxu0 %v337
    %1461 = vmatprep.subr.bf16.mxu0 %v342
    %1462 = vmatpush1.bf16.msra.mxu0 %v341
    %1463 = vmatprep.subr.bf16.mxu0 %v346
    %1464 = vmatpush1.bf16.msra.mxu0 %v345
    %1465 = vmatprep.subr.bf16.mxu0 %v350
    %1466 = vmatpush1.bf16.msra.mxu0 %v349
    %1467 = vmatprep.subr.bf16.mxu0 0
    %1468 = vmatpush1.bf16.msra.mxu0 0
    %1469 = vmatprep.subr.bf16.mxu0 0
    %1470 = vmatpush1.bf16.msra.mxu0 0
    %1471 = vmatprep.subr.bf16.mxu0 0
    %1472 = vmatpush1.bf16.msra.mxu0 0
    %1473 = vmatprep.subr.bf16.mxu0 0
    %1474 = vmatpush1.bf16.msra.mxu0 0
    %1475 = vmatprep.subr.bf16.mxu0 0
    %1476 = vmatpush1.bf16.msra.mxu0 0
    %1477 = vmatprep.subr.bf16.mxu0 0
    %1478 = vmatpush1.bf16.msra.mxu0 0
    %1479 = vmatprep.subr.bf16.mxu0 0
    %1480 = vmatpush1.bf16.msra.mxu0 0
    %1481 = vmatprep.subr.bf16.mxu0 0
    %1482 = vmatpush1.bf16.msra.mxu0 0
    %1483 = vmatprep.subr.bf16.mxu0 0
    %1484 = vmatpush1.bf16.msra.mxu0 0
    %1485 = vmatprep.subr.bf16.mxu0 0
    %1486 = vmatpush1.bf16.msra.mxu0 0
    %1487 = vmatprep.subr.bf16.mxu0 0
    %1488 = vmatpush1.bf16.msra.mxu0 0
    %1489 = vmatprep.subr.bf16.mxu0 0
    %1490 = vmatpush1.bf16.msra.mxu0 0
    %1491 = vmatprep.mubr.bf16.mxu0 0
    %1492 = vmatmul.mubr.bf16.gmra.mrb[0].mxu0 %v1457
    %v1493 = vpop.f32.mrb[0].mxu0
    %v1494 = vadd.f32 0.0, %v1493
    %v1495 = vpop.f32.mrb[0].mxu0
    %v1496 = vadd.f32 0.0, %v1495
    %v1497 = vpop.f32.mrb[0].mxu0
    %v1498 = vpop.f32.mrb[0].mxu0
    %1499 = vdwg.mxu0
    %1500 = vmatprep.subr.bf16.mxu0 %v340
    %1501 = vmatpush1.bf16.msra.mxu0 %v339
    %1502 = vmatprep.subr.bf16.mxu0 %v344
    %1503 = vmatpush1.bf16.msra.mxu0 %v343
    %1504 = vmatprep.subr.bf16.mxu0 %v348
    %1505 = vmatpush1.bf16.msra.mxu0 %v347
    %1506 = vmatprep.subr.bf16.mxu0 %v352
    %1507 = vmatpush1.bf16.msra.mxu0 %v351
    %1508 = vmatprep.subr.bf16.mxu0 0
    %1509 = vmatpush1.bf16.msra.mxu0 0
    %1510 = vmatprep.subr.bf16.mxu0 0
    %1511 = vmatpush1.bf16.msra.mxu0 0
    %1512 = vmatprep.subr.bf16.mxu0 0
    %1513 = vmatpush1.bf16.msra.mxu0 0
    %1514 = vmatprep.subr.bf16.mxu0 0
    %1515 = vmatpush1.bf16.msra.mxu0 0
    %1516 = vmatprep.subr.bf16.mxu0 0
    %1517 = vmatpush1.bf16.msra.mxu0 0
    %1518 = vmatprep.subr.bf16.mxu0 0
    %1519 = vmatpush1.bf16.msra.mxu0 0
    %1520 = vmatprep.subr.bf16.mxu0 0
    %1521 = vmatpush1.bf16.msra.mxu0 0
    %1522 = vmatprep.subr.bf16.mxu0 0
    %1523 = vmatpush1.bf16.msra.mxu0 0
    %1524 = vmatprep.subr.bf16.mxu0 0
    %1525 = vmatpush1.bf16.msra.mxu0 0
    %1526 = vmatprep.subr.bf16.mxu0 0
    %1527 = vmatpush1.bf16.msra.mxu0 0
    %1528 = vmatprep.subr.bf16.mxu0 0
    %1529 = vmatpush1.bf16.msra.mxu0 0
    %1530 = vmatprep.subr.bf16.mxu0 0
    %1531 = vmatpush1.bf16.msra.mxu0 0
    %1532 = vmatprep.mubr.bf16.mxu0 0
    %1533 = vmatmul.mubr.bf16.gmra.mrb[0].mxu0 %v1457
    %v1534 = vpop.f32.mrb[0].mxu0
    %v1535 = vadd.f32 0.0, %v1534
    %v1536 = vpop.f32.mrb[0].mxu0
    %v1537 = vadd.f32 0.0, %v1536
    %v1538 = vpop.f32.mrb[0].mxu0
    %v1539 = vpop.f32.mrb[0].mxu0
    %1540 = vdwg.mxu0
    %v1541 = vadd.f32 %v1535, %v1407
    %v1542 = vadd.f32 %v1537, %v1409
    %v1543 = vadd.f32 %v1541, %v461
    %v1544 = vadd.f32 %v1542, %v465
    %v1545 = vxor.u32 %v1543, 2147483648
    %v1546 = vxor.u32 %v1544, 2147483648
    %v1547 = vmul.f32 %v1545, 1.442695
    %v1548 = vpow.pop %v1547
    %v1549 = vmul.f32 %v1546, 1.442695
    %v1550 = vpow.pop %v1549
    %v1551 = vadd.f32 %v1548, 1.0
    %v1552 = vadd.f32 %v1550, 1.0
    %v1553 = vrcp.pop %v1551
    %v1554 = vmul.f32 1.0, %v1553
    %v1555 = vrcp.pop %v1552
    %v1556 = vmul.f32 1.0, %v1555
    %v1557 = vtanh.pop %v1544
    %v1558 = vmul.f32 %v1554, %v1361
    %1560 = vrot.lane.b32.xlu0 %v1557, 64
    %v1561 = vpop.permute.xlu0 %1560
    %v1563 = vmul.f32 %v1554, %v1561
    %1565 = vrot.lane.b32.xlu0 %v1563, 64
    %v1566 = vpop.permute.xlu0 %1565
    %v1568 = vadd.f32 %v1558, %v1566
    %v1569 = vtanh.pop %v1568
    %1571 = vrot.lane.b32.xlu0 %v1569, 64
    %v1572 = vpop.permute.xlu0 %1571
    %v1574 = vmul.f32 %v1556, %v1572
    %v1575 = vpack.c.bf16 %v1574, %v1574
    %v1577 = vsel %vm369, %v1575, 0
    %1579 = vmatprep.subr.bf16.mxu0 %v526
    %1580 = vmatpush1.bf16.msra.mxu0 %v525
    %1581 = vmatprep.subr.bf16.mxu0 %v528
    %1582 = vmatpush1.bf16.msra.mxu0 %v527
    %1583 = vmatprep.subr.bf16.mxu0 %v530
    %1584 = vmatpush1.bf16.msra.mxu0 %v529
    %1585 = vmatprep.subr.bf16.mxu0 %v532
    %1586 = vmatpush1.bf16.msra.mxu0 %v531
    %1587 = vmatprep.subr.bf16.mxu0 0
    %1588 = vmatpush1.bf16.msra.mxu0 0
    %1589 = vmatprep.subr.bf16.mxu0 0
    %1590 = vmatpush1.bf16.msra.mxu0 0
    %1591 = vmatprep.subr.bf16.mxu0 0
    %1592 = vmatpush1.bf16.msra.mxu0 0
    %1593 = vmatprep.subr.bf16.mxu0 0
    %1594 = vmatpush1.bf16.msra.mxu0 0
    %1595 = vmatprep.subr.bf16.mxu0 0
    %1596 = vmatpush1.bf16.msra.mxu0 0
    %1597 = vmatprep.subr.bf16.mxu0 0
    %1598 = vmatpush1.bf16.msra.mxu0 0
    %1599 = vmatprep.subr.bf16.mxu0 0
    %1600 = vmatpush1.bf16.msra.mxu0 0
    %1601 = vmatprep.subr.bf16.mxu0 0
    %1602 = vmatpush1.bf16.msra.mxu0 0
    %1603 = vmatprep.subr.bf16.mxu0 0
    %1604 = vmatpush1.bf16.msra.mxu0 0
    %1605 = vmatprep.subr.bf16.mxu0 0
    %1606 = vmatpush1.bf16.msra.mxu0 0
    %1607 = vmatprep.subr.bf16.mxu0 0
    %1608 = vmatpush1.bf16.msra.mxu0 0
    %1609 = vmatprep.subr.bf16.mxu0 0
    %1610 = vmatpush1.bf16.msra.mxu0 0
    %1611 = vmatprep.mubr.bf16.mxu0 0
    %1612 = vmatmul.mubr.bf16.gmra.mrb[0].mxu0 %v1577
    %v1613 = vpop.f32.mrb[0].mxu0
    %v1614 = vadd.f32 0.0, %v1613
    %v1615 = vpop.f32.mrb[0].mxu0
    %v1616 = vadd.f32 0.0, %v1615
    %v1617 = vpop.f32.mrb[0].mxu0
    %v1618 = vpop.f32.mrb[0].mxu0
    %1619 = vdwg.mxu0
    %s1620 = scalar_lea.vmem [#allocation2], 24
    %v1621 = vld [vmem:[%s1620] sm:$0xf]
    %v1624 = vcombine.low %v1494, %v1496
    %v1626 = vunpack.c.l.s4 1983009808
    %v1627 = vunpack.c.0.s8 %v1626
    %v1628 = vlaneseq
    %v1629 = vshrl.u32 %v1628, 7
    %v1630 = vsub.s32 %v1627, %v1629
    %v1631 = vrot.slane %v1624, %v1630
    %v1633 = vadd.f32 %v1621, %v1631
    %v1634 = vxor.u32 %v1633, 2147483648
    %v1635 = vmul.f32 %v1634, 1.442695
    %v1636 = vpow.pop %v1635
    %v1637 = vadd.f32 %v1636, 1.0
    %v1638 = vrcp.pop %v1637
    %v1639 = vmul.f32 1.0, %v1638
    %1641 = vrot.lane.b32.xlu0 %v1633, 64
    %v1642 = vpop.permute.xlu0 %1641
    %v1643 = vrot.slane %v1642, 2
    %v1645 = vtanh.pop %v1643
    %v1646 = vmul.f32 %v1639, %v1445
    %v1647 = vmul.f32 %v1639, %v1645
    %1649 = vrot.lane.b32.xlu0 %v1647, 64
    %v1650 = vpop.permute.xlu0 %1649
    %v1652 = vadd.f32 %v1646, %v1650
    %v1653 = vtanh.pop %v1652
    %v1655 = vrot.slane %v1639, 2
    %1658 = vrot.lane.b32.xlu0 %v1653, 64
    %v1659 = vpop.permute.xlu0 %1658
    %v1661 = vmul.f32 %v1655, %v1659
    %v1662 = vpack.c.bf16 %v1661, %v1661
    %v1664 = vsel %vm369, %v1662, 0
    %1666 = vmatprep.subr.bf16.mxu0 %v338
    %1667 = vmatpush1.bf16.msra.mxu0 %v337
    %1668 = vmatprep.subr.bf16.mxu0 %v342
    %1669 = vmatpush1.bf16.msra.mxu0 %v341
    %1670 = vmatprep.subr.bf16.mxu0 %v346
    %1671 = vmatpush1.bf16.msra.mxu0 %v345
    %1672 = vmatprep.subr.bf16.mxu0 %v350
    %1673 = vmatpush1.bf16.msra.mxu0 %v349
    %1674 = vmatprep.subr.bf16.mxu0 0
    %1675 = vmatpush1.bf16.msra.mxu0 0
    %1676 = vmatprep.subr.bf16.mxu0 0
    %1677 = vmatpush1.bf16.msra.mxu0 0
    %1678 = vmatprep.subr.bf16.mxu0 0
    %1679 = vmatpush1.bf16.msra.mxu0 0
    %1680 = vmatprep.subr.bf16.mxu0 0
    %1681 = vmatpush1.bf16.msra.mxu0 0
    %1682 = vmatprep.subr.bf16.mxu0 0
    %1683 = vmatpush1.bf16.msra.mxu0 0
    %1684 = vmatprep.subr.bf16.mxu0 0
    %1685 = vmatpush1.bf16.msra.mxu0 0
    %1686 = vmatprep.subr.bf16.mxu0 0
    %1687 = vmatpush1.bf16.msra.mxu0 0
    %1688 = vmatprep.subr.bf16.mxu0 0
    %1689 = vmatpush1.bf16.msra.mxu0 0
    %1690 = vmatprep.subr.bf16.mxu0 0
    %1691 = vmatpush1.bf16.msra.mxu0 0
    %1692 = vmatprep.subr.bf16.mxu0 0
    %1693 = vmatpush1.bf16.msra.mxu0 0
    %1694 = vmatprep.subr.bf16.mxu0 0
    %1695 = vmatpush1.bf16.msra.mxu0 0
    %1696 = vmatprep.subr.bf16.mxu0 0
    %1697 = vmatpush1.bf16.msra.mxu0 0
    %1698 = vmatprep.mubr.bf16.mxu0 0
    %1699 = vmatmul.mubr.bf16.gmra.mrb[0].mxu0 %v1664
    %v1700 = vpop.f32.mrb[0].mxu0
    %v1701 = vadd.f32 0.0, %v1700
    %v1702 = vpop.f32.mrb[0].mxu0
    %v1703 = vadd.f32 0.0, %v1702
    %v1704 = vpop.f32.mrb[0].mxu0
    %v1705 = vpop.f32.mrb[0].mxu0
    %1706 = vdwg.mxu0
    %1707 = vmatprep.subr.bf16.mxu0 %v340
    %1708 = vmatpush1.bf16.msra.mxu0 %v339
    %1709 = vmatprep.subr.bf16.mxu0 %v344
    %1710 = vmatpush1.bf16.msra.mxu0 %v343
    %1711 = vmatprep.subr.bf16.mxu0 %v348
    %1712 = vmatpush1.bf16.msra.mxu0 %v347
    %1713 = vmatprep.subr.bf16.mxu0 %v352
    %1714 = vmatpush1.bf16.msra.mxu0 %v351
    %1715 = vmatprep.subr.bf16.mxu0 0
    %1716 = vmatpush1.bf16.msra.mxu0 0
    %1717 = vmatprep.subr.bf16.mxu0 0
    %1718 = vmatpush1.bf16.msra.mxu0 0
    %1719 = vmatprep.subr.bf16.mxu0 0
    %1720 = vmatpush1.bf16.msra.mxu0 0
    %1721 = vmatprep.subr.bf16.mxu0 0
    %1722 = vmatpush1.bf16.msra.mxu0 0
    %1723 = vmatprep.subr.bf16.mxu0 0
    %1724 = vmatpush1.bf16.msra.mxu0 0
    %1725 = vmatprep.subr.bf16.mxu0 0
    %1726 = vmatpush1.bf16.msra.mxu0 0
    %1727 = vmatprep.subr.bf16.mxu0 0
    %1728 = vmatpush1.bf16.msra.mxu0 0
    %1729 = vmatprep.subr.bf16.mxu0 0
    %1730 = vmatpush1.bf16.msra.mxu0 0
    %1731 = vmatprep.subr.bf16.mxu0 0
    %1732 = vmatpush1.bf16.msra.mxu0 0
    %1733 = vmatprep.subr.bf16.mxu0 0
    %1734 = vmatpush1.bf16.msra.mxu0 0
    %1735 = vmatprep.subr.bf16.mxu0 0
    %1736 = vmatpush1.bf16.msra.mxu0 0
    %1737 = vmatprep.subr.bf16.mxu0 0
    %1738 = vmatpush1.bf16.msra.mxu0 0
    %1739 = vmatprep.mubr.bf16.mxu0 0
    %1740 = vmatmul.mubr.bf16.gmra.mrb[0].mxu0 %v1664
    %v1741 = vpop.f32.mrb[0].mxu0
    %v1742 = vadd.f32 0.0, %v1741
    %v1743 = vpop.f32.mrb[0].mxu0
    %v1744 = vadd.f32 0.0, %v1743
    %v1745 = vpop.f32.mrb[0].mxu0
    %v1746 = vpop.f32.mrb[0].mxu0
    %1747 = vdwg.mxu0
    %v1748 = vadd.f32 %v1742, %v1614
    %v1749 = vadd.f32 %v1744, %v1616
    %v1750 = vadd.f32 %v1748, %v461
    %v1751 = vadd.f32 %v1749, %v465
    %v1752 = vxor.u32 %v1750, 2147483648
    %v1753 = vxor.u32 %v1751, 2147483648
    %v1754 = vmul.f32 %v1752, 1.442695
    %v1755 = vpow.pop %v1754
    %v1756 = vmul.f32 %v1753, 1.442695
    %v1757 = vpow.pop %v1756
    %v1758 = vadd.f32 %v1755, 1.0
    %v1759 = vadd.f32 %v1757, 1.0
    %v1760 = vrcp.pop %v1758
    %v1761 = vmul.f32 1.0, %v1760
    %v1762 = vrcp.pop %v1759
    %v1763 = vmul.f32 1.0, %v1762
    %v1764 = vtanh.pop %v1751
    %v1765 = vmul.f32 %v1761, %v1568
    %1767 = vrot.lane.b32.xlu0 %v1764, 64
    %v1768 = vpop.permute.xlu0 %1767
    %v1770 = vmul.f32 %v1761, %v1768
    %1772 = vrot.lane.b32.xlu0 %v1770, 64
    %v1773 = vpop.permute.xlu0 %1772
    %v1775 = vadd.f32 %v1765, %v1773
    %v1776 = vtanh.pop %v1775
    %1778 = vrot.lane.b32.xlu0 %v1776, 64
    %v1779 = vpop.permute.xlu0 %1778
    %v1781 = vmul.f32 %v1763, %v1779
    %v1782 = vpack.c.bf16 %v1781, %v1781
    %v1784 = vsel %vm369, %v1782, 0
    %1786 = vmatprep.subr.bf16.mxu0 %v526
    %1787 = vmatpush1.bf16.msra.mxu0 %v525
    %1788 = vmatprep.subr.bf16.mxu0 %v528
    %1789 = vmatpush1.bf16.msra.mxu0 %v527
    %1790 = vmatprep.subr.bf16.mxu0 %v530
    %1791 = vmatpush1.bf16.msra.mxu0 %v529
    %1792 = vmatprep.subr.bf16.mxu0 %v532
    %1793 = vmatpush1.bf16.msra.mxu0 %v531
    %1794 = vmatprep.subr.bf16.mxu0 0
    %1795 = vmatpush1.bf16.msra.mxu0 0
    %1796 = vmatprep.subr.bf16.mxu0 0
    %1797 = vmatpush1.bf16.msra.mxu0 0
    %1798 = vmatprep.subr.bf16.mxu0 0
    %1799 = vmatpush1.bf16.msra.mxu0 0
    %1800 = vmatprep.subr.bf16.mxu0 0
    %1801 = vmatpush1.bf16.msra.mxu0 0
    %1802 = vmatprep.subr.bf16.mxu0 0
    %1803 = vmatpush1.bf16.msra.mxu0 0
    %1804 = vmatprep.subr.bf16.mxu0 0
    %1805 = vmatpush1.bf16.msra.mxu0 0
    %1806 = vmatprep.subr.bf16.mxu0 0
    %1807 = vmatpush1.bf16.msra.mxu0 0
    %1808 = vmatprep.subr.bf16.mxu0 0
    %1809 = vmatpush1.bf16.msra.mxu0 0
    %1810 = vmatprep.subr.bf16.mxu0 0
    %1811 = vmatpush1.bf16.msra.mxu0 0
    %1812 = vmatprep.subr.bf16.mxu0 0
    %1813 = vmatpush1.bf16.msra.mxu0 0
    %1814 = vmatprep.subr.bf16.mxu0 0
    %1815 = vmatpush1.bf16.msra.mxu0 0
    %1816 = vmatprep.subr.bf16.mxu0 0
    %1817 = vmatpush1.bf16.msra.mxu0 0
    %1818 = vmatprep.mubr.bf16.mxu0 0
    %1819 = vmatmul.mubr.bf16.gmra.mrb[0].mxu0 %v1784
    %v1820 = vpop.f32.mrb[0].mxu0
    %v1821 = vadd.f32 0.0, %v1820
    %v1822 = vpop.f32.mrb[0].mxu0
    %v1823 = vadd.f32 0.0, %v1822
    %v1824 = vpop.f32.mrb[0].mxu0
    %v1825 = vpop.f32.mrb[0].mxu0
    %1826 = vdwg.mxu0
    %s1827 = scalar_lea.vmem [#allocation2], 28
    %v1828 = vld [vmem:[%s1827] sm:$0xf]
    %v1831 = vcombine.low %v1701, %v1703
    %v1833 = vunpack.c.l.s4 1983009808
    %v1834 = vunpack.c.0.s8 %v1833
    %v1835 = vlaneseq
    %v1836 = vshrl.u32 %v1835, 7
    %v1837 = vsub.s32 %v1834, %v1836
    %v1838 = vrot.slane %v1831, %v1837
    %v1840 = vadd.f32 %v1828, %v1838
    %v1841 = vxor.u32 %v1840, 2147483648
    %v1842 = vmul.f32 %v1841, 1.442695
    %v1843 = vpow.pop %v1842
    %v1844 = vadd.f32 %v1843, 1.0
    %v1845 = vrcp.pop %v1844
    %v1846 = vmul.f32 1.0, %v1845
    %1848 = vrot.lane.b32.xlu0 %v1840, 64
    %v1849 = vpop.permute.xlu0 %1848
    %v1850 = vrot.slane %v1849, 2
    %v1852 = vtanh.pop %v1850
    %v1853 = vmul.f32 %v1846, %v1652
    %v1854 = vmul.f32 %v1846, %v1852
    %1856 = vrot.lane.b32.xlu0 %v1854, 64
    %v1857 = vpop.permute.xlu0 %1856
    %v1859 = vadd.f32 %v1853, %v1857
    %v1860 = vtanh.pop %v1859
    %v1862 = vrot.slane %v1846, 2
    %1865 = vrot.lane.b32.xlu0 %v1860, 64
    %v1866 = vpop.permute.xlu0 %1865
    %v1868 = vmul.f32 %v1862, %v1866
    %v1869 = vpack.c.bf16 %v1868, %v1868
    %v1871 = vsel %vm369, %v1869, 0
    %1873 = vmatprep.subr.bf16.mxu0 %v340
    %1874 = vmatpush1.bf16.msra.mxu0 %v339
    %1875 = vmatprep.subr.bf16.mxu0 %v344
    %1876 = vmatpush1.bf16.msra.mxu0 %v343
    %1877 = vmatprep.subr.bf16.mxu0 %v348
    %1878 = vmatpush1.bf16.msra.mxu0 %v347
    %1879 = vmatprep.subr.bf16.mxu0 %v352
    %1880 = vmatpush1.bf16.msra.mxu0 %v351
    %1881 = vmatprep.subr.bf16.mxu0 0
    %1882 = vmatpush1.bf16.msra.mxu0 0
    %1883 = vmatprep.subr.bf16.mxu0 0
    %1884 = vmatpush1.bf16.msra.mxu0 0
    %1885 = vmatprep.subr.bf16.mxu0 0
    %1886 = vmatpush1.bf16.msra.mxu0 0
    %1887 = vmatprep.subr.bf16.mxu0 0
    %1888 = vmatpush1.bf16.msra.mxu0 0
    %1889 = vmatprep.subr.bf16.mxu0 0
    %1890 = vmatpush1.bf16.msra.mxu0 0
    %1891 = vmatprep.subr.bf16.mxu0 0
    %1892 = vmatpush1.bf16.msra.mxu0 0
    %1893 = vmatprep.subr.bf16.mxu0 0
    %1894 = vmatpush1.bf16.msra.mxu0 0
    %1895 = vmatprep.subr.bf16.mxu0 0
    %1896 = vmatpush1.bf16.msra.mxu0 0
    %1897 = vmatprep.subr.bf16.mxu0 0
    %1898 = vmatpush1.bf16.msra.mxu0 0
    %1899 = vmatprep.subr.bf16.mxu0 0
    %1900 = vmatpush1.bf16.msra.mxu0 0
    %1901 = vmatprep.subr.bf16.mxu0 0
    %1902 = vmatpush1.bf16.msra.mxu0 0
    %1903 = vmatprep.subr.bf16.mxu0 0
    %1904 = vmatpush1.bf16.msra.mxu0 0
    %1905 = vmatprep.mubr.bf16.mxu0 0
    %1906 = vmatmul.mubr.bf16.gmra.mrb[0].mxu0 %v1871
    %v1907 = vpop.f32.mrb[0].mxu0
    %v1908 = vadd.f32 0.0, %v1907
    %v1909 = vpop.f32.mrb[0].mxu0
    %v1910 = vadd.f32 0.0, %v1909
    %v1911 = vpop.f32.mrb[0].mxu0
    %v1912 = vpop.f32.mrb[0].mxu0
    %1913 = vdwg.mxu0
    %v1914 = vadd.f32 %v1908, %v1821
    %v1915 = vadd.f32 %v1910, %v1823
    %v1916 = vadd.f32 %v1914, %v461
    %v1917 = vadd.f32 %v1915, %v465
    %v1918 = vxor.u32 %v1916, 2147483648
    %v1919 = vxor.u32 %v1917, 2147483648
    %v1920 = vmul.f32 %v1918, 1.442695
    %v1921 = vpow.pop %v1920
    %v1922 = vmul.f32 %v1919, 1.442695
    %v1923 = vpow.pop %v1922
    %v1924 = vadd.f32 %v1921, 1.0
    %v1925 = vadd.f32 %v1923, 1.0
    %v1926 = vrcp.pop %v1924
    %v1927 = vmul.f32 1.0, %v1926
    %v1928 = vrcp.pop %v1925
    %v1929 = vmul.f32 1.0, %v1928
    %v1930 = vtanh.pop %v1917
    %v1931 = vmul.f32 %v1927, %v1775
    %1933 = vrot.lane.b32.xlu0 %v1930, 64
    %v1934 = vpop.permute.xlu0 %1933
    %v1936 = vmul.f32 %v1927, %v1934
    %1938 = vrot.lane.b32.xlu0 %v1936, 64
    %v1939 = vpop.permute.xlu0 %1938
    %v1941 = vadd.f32 %v1931, %v1939
    %v1942 = vtanh.pop %v1941
    %1944 = vrot.lane.b32.xlu0 %v1942, 64
    %v1945 = vpop.permute.xlu0 %1944
    %v1947 = vmul.f32 %v1929, %v1945
    %v1948 = vmul.f32 %v1947, %v34
    %vm1949 = vcmask 517120
    %v1950 = vsel %vm1949, %v1948, 0.0
    %1951 = vadd.xlane.f32.xlu0 %v1950
    %v1952 = vpop.xlane.xlu0 %1951
    %v1953 = vadd.f32 %v1952, %v35
    %vm1954 = vcmask 1024
    %1955 = vst.msk [vmem:[%s3] sm:$0x3] %vm1954, %v1953
    // Predicated region
    $region18: #{tpu_custom_call.1} parent=1 // pred_check
      _
    $region19: #{tpu_custom_call.1} parent=1 // pred_check_branch
      %1957 = sbr.rel (0) target = $region21
    $region20: #{tpu_custom_call.1} parent=1 // pred_region
      _
    $region21: #{tpu_custom_call.1} parent=1 // pred_fallthru
      _
    // Predicated region
    $region22: #{tpu_custom_call.1} parent=1 // pred_check
      _
    $region23: #{tpu_custom_call.1} parent=1 // pred_check_branch
      %1959 = sbr.rel (0) target = $region25
    $region24: #{tpu_custom_call.1} parent=1 // pred_region
      _
    $region25: #{tpu_custom_call.1} parent=1 // pred_fallthru
      _
    %1960 = vsyncpa [#allocation4], 1

</llo_original>
